<compile_context>
chip_gen: v5e
topology: v5e:2x2
jax: 0.10.0
libtpu: 0.0.40
codegen_flags: <defaults>
</compile_context>

<pallas_src>
import jax
import jax.numpy as jnp
from jax.experimental import pallas as pl
from jax.experimental.pallas import tpu as pltpu


def sptevi_kernel(st_ref, vis_ref,
                  w_st_ref, b_st_ref,
                  w_vi_ref, b_vi_ref,
                  w_f_st_ref, w_f_vi_ref, b_f_ref,
                  w_p_ref, b_p_ref,
                  out_ref):
    # spte branch: Linear(9 -> 128) + ReLU  (f32, tiny K).
    st_feat = jnp.dot(st_ref[...], w_st_ref[...],
                      preferred_element_type=jnp.float32) + b_st_ref[...]
    st_feat = jnp.maximum(st_feat, 0.0)

    # vi branch: Linear(4096 -> 128) + ReLU.
    # Cast to bf16 in-kernel (VPU op, hidden under the DMA bound) so the MXU
    # runs the bf16 path with f32 accumulation; no-op if the producer already
    # handed us bf16.  No wrapper-side convert => no extra HBM pass.
    vis = vis_ref[...].astype(jnp.bfloat16)
    vi_feat = jnp.dot(vis, w_vi_ref[...],
                      preferred_element_type=jnp.float32) + b_vi_ref[...]
    vi_feat = jnp.maximum(vi_feat, 0.0)

    # fusion: Linear(256 -> 128) over cat([st_feat, vi_feat], -1) + ReLU.
    # cat realised as split-weight matmuls (no cross-lane concat needed).
    fused = (jnp.dot(st_feat, w_f_st_ref[...], preferred_element_type=jnp.float32)
             + jnp.dot(vi_feat, w_f_vi_ref[...], preferred_element_type=jnp.float32)
             + b_f_ref[...])
    fused = jnp.maximum(fused, 0.0)

    # predict: Linear(128 -> 1), no activation.
    out_ref[...] = (jnp.dot(fused, w_p_ref[...],
                            preferred_element_type=jnp.float32)
                    + b_p_ref[...]).astype(out_ref.dtype)


def _round_up(x, m):
    return ((x + m - 1) // m) * m


def _round_down(x, m):
    return (x // m) * m


def sptevi_forward(spatialtemporal, visual, params, *, block_rows=1024):
    """Batch-tiled, double-buffered SpTeVi forward (HBM-bound on `visual`)."""
    (w_st, b_st, w_vi, b_vi, w_f_st, w_f_vi, b_f, w_p, b_p) = params
    weights = (w_st, b_st, w_vi, b_vi, w_f_st, w_f_vi, b_f, w_p, b_p)

    B, D_st = spatialtemporal.shape
    D_vis = visual.shape[1]

    # Per-row HBM/VMEM bytes for the batch-tiled operands (visual dominates).
    row_bytes = (D_vis * visual.dtype.itemsize
                 + D_st * spatialtemporal.dtype.itemsize
                 + 1 * 4)                                   # output row (f32)
    weight_bytes = sum(int(w.size) * w.dtype.itemsize for w in weights)

    # Batch tile: as large as an explicit VMEM budget allows (double-buffered
    # tiles + resident weights kept well under v7x's 64 MiB VMEM; v5e/v6e have
    # 128 MiB).  Large tiles amortize the ~0.35us per-grid-step overhead and
    # issue bigger, more efficient DMAs.
    vmem_budget = 40 << 20
    max_tb = max(8, _round_down((vmem_budget - 2 * weight_bytes) // (2 * row_bytes), 8))
    tb = min(block_rows, max_tb, _round_up(B, 8))
    grid = (pl.cdiv(B, tb),)

    def tile_spec(cols):
        return pl.BlockSpec((tb, cols), lambda i: (i, 0))

    def const_spec(arr):
        # Constant block index across the grid => Pallas keeps the buffer
        # resident and skips the re-DMA every batch tile.
        return pl.BlockSpec(arr.shape, lambda i: (0, 0))

    # Right-size the VMEM limit from the actual footprint:
    # 2 pipeline buffers per batch-tiled operand + the resident weights + headroom.
    vmem_limit = int(2 * tb * row_bytes + 2 * weight_bytes + (8 << 20))

    return pl.pallas_call(
        sptevi_kernel,
        out_shape=jax.ShapeDtypeStruct((B, 1), jnp.float32),
        grid=grid,
        in_specs=[
            tile_spec(D_st),    # spatialtemporal [tb, 9]
            tile_spec(D_vis),   # visual          [tb, 4096] (double-buffered)
            *(const_spec(w) for w in weights),
        ],
        out_specs=tile_spec(1),
        compiler_params=pltpu.CompilerParams(
            dimension_semantics=("parallel",),
            vmem_limit_bytes=vmem_limit),
    )(spatialtemporal, visual, *weights)


def init_params(key):
    # Deterministic synthetic weights mirroring the nn.Linear shapes in __init__.
    # Stored as [in, out] (transposed vs. PyTorch's [out, in]); biases as [1, out].
    # w_vi is converted to bf16 ONCE here (not per forward call).
    ks = jax.random.split(key, 8)
    scale = 0.05
    w_st = scale * jax.random.normal(ks[0], (9, 128), jnp.float32)
    b_st = scale * jax.random.normal(ks[1], (1, 128), jnp.float32)
    w_vi = (scale * jax.random.normal(ks[2], (4096, 128), jnp.float32)).astype(jnp.bfloat16)
    b_vi = scale * jax.random.normal(ks[3], (1, 128), jnp.float32)
    w_f = scale * jax.random.normal(ks[4], (256, 128), jnp.float32)
    b_f = scale * jax.random.normal(ks[5], (1, 128), jnp.float32)
    w_p = scale * jax.random.normal(ks[6], (128, 1), jnp.float32)
    b_p = scale * jax.random.normal(ks[7], (1, 1), jnp.float32)
    # Split fusion weight into the half acting on spte features (first 128 concat
    # lanes) and the half acting on visual features (last 128 lanes).
    w_f_st, w_f_vi = w_f[:128], w_f[128:]
    return (w_st, b_st, w_vi, b_vi, w_f_st, w_f_vi, b_f, w_p, b_p), w_f


def reference_forward(spatialtemporal, visual, params, w_f):
    """Pure-JAX reference using the same bf16 vi-matmul path (f32 accumulation)."""
    (w_st, b_st, w_vi, b_vi, _, _, b_f, w_p, b_p) = params
    st = jax.nn.relu(spatialtemporal @ w_st + b_st)
    vi = jax.nn.relu(jnp.dot(visual.astype(jnp.bfloat16), w_vi,
                             preferred_element_type=jnp.float32) + b_vi)
    cat = jnp.concatenate([st, vi], axis=-1)
    fu = jax.nn.relu(cat @ w_f + b_f)
    return fu @ w_p + b_p


def _check(spatialtemporal, visual, params, w_f, **kwargs):
    out = jax.block_until_ready(sptevi_forward(spatialtemporal, visual, params, **kwargs))
    ref = reference_forward(spatialtemporal, visual, params, w_f)
    assert out.shape == ref.shape
    assert jnp.allclose(out, ref, atol=5e-3, rtol=5e-3), (
        f"max abs diff {jnp.max(jnp.abs(out - ref))}")


if __name__ == "__main__":
    key = jax.random.PRNGKey(0)
    k_st, k_vi, k_st2, k_vi2, k_p = jax.random.split(key, 5)

    params, w_f = init_params(k_p)

    # Test 1: small batch, single grid step.
    B = 2
    spatialtemporal = jax.random.normal(k_st, (B, 9), jnp.float32)
    visual = jax.random.normal(k_vi, (B, 4096), jnp.float32)
    _check(spatialtemporal, visual, params, w_f)

    # Test 2: multi-tile + partial last tile (B > tb, B % tb != 0, B % 8 != 0).
    B2 = 37
    st2 = jax.random.normal(k_st2, (B2, 9), jnp.float32)
    vis2 = jax.random.normal(k_vi2, (B2, 4096), jnp.float32)
    _check(st2, vis2, params, w_f, block_rows=16)

    print("KERNEL_OK")
</pallas_src>

<mosaic_0001>
module attributes {stable_mosaic.version = 11 : i64} {
  func.func @sptevi_kernel(%arg0: i32, %arg1: memref<8x9xf32, #tpu.memory_space<vmem>>, %arg2: memref<8x4096xf32, #tpu.memory_space<vmem>>, %arg3: memref<9x128xf32, #tpu.memory_space<vmem>>, %arg4: memref<1x128xf32, #tpu.memory_space<vmem>>, %arg5: memref<4096x128xbf16, #tpu.memory_space<vmem>>, %arg6: memref<1x128xf32, #tpu.memory_space<vmem>>, %arg7: memref<128x128xf32, #tpu.memory_space<vmem>>, %arg8: memref<128x128xf32, #tpu.memory_space<vmem>>, %arg9: memref<1x128xf32, #tpu.memory_space<vmem>>, %arg10: memref<128x1xf32, #tpu.memory_space<vmem>>, %arg11: memref<1x1xf32, #tpu.memory_space<vmem>>, %arg12: memref<8x1xf32, #tpu.memory_space<vmem>>) attributes {dimension_semantics = [#tpu.dimension_semantics<parallel>], iteration_bounds = array<i64: 1>, scalar_prefetch = 0 : i64, scratch_operands = 0 : i64, tpu.core_type = #tpu.core_type<tc>, window_params = [{transform_indices = @transform_0, window_bounds = array<i64: 8, 9>}, {transform_indices = @transform_1, window_bounds = array<i64: 8, 4096>}, {pipeline_mode = #tpu.pipeline_mode<synchronous>, transform_indices = @transform_2, window_bounds = array<i64: 9, 128>}, {pipeline_mode = #tpu.pipeline_mode<synchronous>, transform_indices = @transform_3, window_bounds = array<i64: 1, 128>}, {pipeline_mode = #tpu.pipeline_mode<synchronous>, transform_indices = @transform_4, window_bounds = array<i64: 4096, 128>}, {pipeline_mode = #tpu.pipeline_mode<synchronous>, transform_indices = @transform_5, window_bounds = array<i64: 1, 128>}, {pipeline_mode = #tpu.pipeline_mode<synchronous>, transform_indices = @transform_6, window_bounds = array<i64: 128, 128>}, {pipeline_mode = #tpu.pipeline_mode<synchronous>, transform_indices = @transform_7, window_bounds = array<i64: 128, 128>}, {pipeline_mode = #tpu.pipeline_mode<synchronous>, transform_indices = @transform_8, window_bounds = array<i64: 1, 128>}, {pipeline_mode = #tpu.pipeline_mode<synchronous>, transform_indices = @transform_9, window_bounds = array<i64: 128, 1>}, {pipeline_mode = #tpu.pipeline_mode<synchronous>, transform_indices = @transform_10, window_bounds = array<i64: 1, 1>}, {transform_indices = @transform_11, window_bounds = array<i64: 8, 1>}]} {
    %c0 = arith.constant 0 : index
    %c0_0 = arith.constant 0 : index
    %0 = vector.load %arg1[%c0, %c0_0] : memref<8x9xf32, #tpu.memory_space<vmem>>, vector<8x9xf32>
    %c0_1 = arith.constant 0 : index
    %c0_2 = arith.constant 0 : index
    %1 = vector.load %arg3[%c0_1, %c0_2] : memref<9x128xf32, #tpu.memory_space<vmem>>, vector<9x128xf32>
    %cst = arith.constant dense<0.000000e+00> : vector<8x128xf32>
    %2 = tpu.matmul %0, %1, %cst {dimension_numbers = #tpu.dot_dimension_numbers<[1], [0], [0], [1], [0, 0, 1, 1], [], []>} : vector<8x9xf32>, vector<9x128xf32>, vector<8x128xf32> -> vector<8x128xf32>
    %c0_3 = arith.constant 0 : index
    %c0_4 = arith.constant 0 : index
    %3 = vector.load %arg4[%c0_3, %c0_4] : memref<1x128xf32, #tpu.memory_space<vmem>>, vector<1x128xf32>
    %4 = vector.broadcast %3 : vector<1x128xf32> to vector<8x128xf32>
    %5 = arith.addf %2, %4 : vector<8x128xf32>
    %cst_5 = arith.constant 0.000000e+00 : f32
    %6 = vector.broadcast %cst_5 : f32 to vector<8x128xf32>
    %7 = arith.maximumf %5, %6 : vector<8x128xf32>
    %c0_6 = arith.constant 0 : index
    %c0_7 = arith.constant 0 : index
    %8 = vector.load %arg2[%c0_6, %c0_7] : memref<8x4096xf32, #tpu.memory_space<vmem>>, vector<8x4096xf32>
    %9 = arith.truncf %8 : vector<8x4096xf32> to vector<8x4096xbf16>
    %c0_8 = arith.constant 0 : index
    %c0_9 = arith.constant 0 : index
    %10 = vector.load %arg5[%c0_8, %c0_9] : memref<4096x128xbf16, #tpu.memory_space<vmem>>, vector<4096x128xbf16>
    %cst_10 = arith.constant dense<0.000000e+00> : vector<8x128xf32>
    %11 = tpu.matmul %9, %10, %cst_10 {dimension_numbers = #tpu.dot_dimension_numbers<[1], [0], [0], [1], [0, 0, 1, 1], [], []>} : vector<8x4096xbf16>, vector<4096x128xbf16>, vector<8x128xf32> -> vector<8x128xf32>
    %c0_11 = arith.constant 0 : index
    %c0_12 = arith.constant 0 : index
    %12 = vector.load %arg6[%c0_11, %c0_12] : memref<1x128xf32, #tpu.memory_space<vmem>>, vector<1x128xf32>
    %13 = vector.broadcast %12 : vector<1x128xf32> to vector<8x128xf32>
    %14 = arith.addf %11, %13 : vector<8x128xf32>
    %cst_13 = arith.constant 0.000000e+00 : f32
    %15 = vector.broadcast %cst_13 : f32 to vector<8x128xf32>
    %16 = arith.maximumf %14, %15 : vector<8x128xf32>
    %c0_14 = arith.constant 0 : index
    %c0_15 = arith.constant 0 : index
    %17 = vector.load %arg7[%c0_14, %c0_15] : memref<128x128xf32, #tpu.memory_space<vmem>>, vector<128x128xf32>
    %cst_16 = arith.constant dense<0.000000e+00> : vector<8x128xf32>
    %18 = tpu.matmul %7, %17, %cst_16 {dimension_numbers = #tpu.dot_dimension_numbers<[1], [0], [0], [1], [0, 0, 1, 1], [], []>} : vector<8x128xf32>, vector<128x128xf32>, vector<8x128xf32> -> vector<8x128xf32>
    %c0_17 = arith.constant 0 : index
    %c0_18 = arith.constant 0 : index
    %19 = vector.load %arg8[%c0_17, %c0_18] : memref<128x128xf32, #tpu.memory_space<vmem>>, vector<128x128xf32>
    %cst_19 = arith.constant dense<0.000000e+00> : vector<8x128xf32>
    %20 = tpu.matmul %16, %19, %cst_19 {dimension_numbers = #tpu.dot_dimension_numbers<[1], [0], [0], [1], [0, 0, 1, 1], [], []>} : vector<8x128xf32>, vector<128x128xf32>, vector<8x128xf32> -> vector<8x128xf32>
    %21 = arith.addf %18, %20 : vector<8x128xf32>
    %c0_20 = arith.constant 0 : index
    %c0_21 = arith.constant 0 : index
    %22 = vector.load %arg9[%c0_20, %c0_21] : memref<1x128xf32, #tpu.memory_space<vmem>>, vector<1x128xf32>
    %23 = vector.broadcast %22 : vector<1x128xf32> to vector<8x128xf32>
    %24 = arith.addf %21, %23 : vector<8x128xf32>
    %cst_22 = arith.constant 0.000000e+00 : f32
    %25 = vector.broadcast %cst_22 : f32 to vector<8x128xf32>
    %26 = arith.maximumf %24, %25 : vector<8x128xf32>
    %c0_23 = arith.constant 0 : index
    %c0_24 = arith.constant 0 : index
    %27 = vector.load %arg10[%c0_23, %c0_24] : memref<128x1xf32, #tpu.memory_space<vmem>>, vector<128x1xf32>
    %cst_25 = arith.constant dense<0.000000e+00> : vector<8x1xf32>
    %28 = tpu.matmul %26, %27, %cst_25 {dimension_numbers = #tpu.dot_dimension_numbers<[1], [0], [0], [1], [0, 0, 1, 1], [], []>} : vector<8x128xf32>, vector<128x1xf32>, vector<8x1xf32> -> vector<8x1xf32>
    %c0_26 = arith.constant 0 : index
    %c0_27 = arith.constant 0 : index
    %29 = vector.load %arg11[%c0_26, %c0_27] : memref<1x1xf32, #tpu.memory_space<vmem>>, vector<1x1xf32>
    %30 = vector.broadcast %29 : vector<1x1xf32> to vector<8x1xf32>
    %31 = arith.addf %28, %30 : vector<8x1xf32>
    %c0_28 = arith.constant 0 : index
    %c0_29 = arith.constant 0 : index
    %32 = vector.load %arg12[%c0_28, %c0_29] : memref<8x1xf32, #tpu.memory_space<vmem>>, vector<8x1xf32>
    tpu.vector_store %arg12[%c0_28, %c0_29], %31 {strides = array<i32>} : memref<8x1xf32, #tpu.memory_space<vmem>>, vector<8x1xf32>,
    return
  }
  func.func @transform_0(%arg0: i32) -> (i32, i32) {
    %c0_i32 = arith.constant 0 : i32
    %c0_i32_0 = arith.constant 0 : i32
    return %arg0, %c0_i32 : i32, i32
  }
  func.func @transform_1(%arg0: i32) -> (i32, i32) {
    %c0_i32 = arith.constant 0 : i32
    %c0_i32_0 = arith.constant 0 : i32
    return %arg0, %c0_i32 : i32, i32
  }
  func.func @transform_2(%arg0: i32) -> (i32, i32) {
    %c0_i32 = arith.constant 0 : i32
    %c0_i32_0 = arith.constant 0 : i32
    %c0_i32_1 = arith.constant 0 : i32
    return %c0_i32, %c0_i32_0 : i32, i32
  }
  func.func @transform_3(%arg0: i32) -> (i32, i32) {
    %c0_i32 = arith.constant 0 : i32
    %c0_i32_0 = arith.constant 0 : i32
    %c0_i32_1 = arith.constant 0 : i32
    return %c0_i32, %c0_i32_0 : i32, i32
  }
  func.func @transform_4(%arg0: i32) -> (i32, i32) {
    %c0_i32 = arith.constant 0 : i32
    %c0_i32_0 = arith.constant 0 : i32
    %c0_i32_1 = arith.constant 0 : i32
    return %c0_i32, %c0_i32_0 : i32, i32
  }
  func.func @transform_5(%arg0: i32) -> (i32, i32) {
    %c0_i32 = arith.constant 0 : i32
    %c0_i32_0 = arith.constant 0 : i32
    %c0_i32_1 = arith.constant 0 : i32
    return %c0_i32, %c0_i32_0 : i32, i32
  }
  func.func @transform_6(%arg0: i32) -> (i32, i32) {
    %c0_i32 = arith.constant 0 : i32
    %c0_i32_0 = arith.constant 0 : i32
    %c0_i32_1 = arith.constant 0 : i32
    return %c0_i32, %c0_i32_0 : i32, i32
  }
  func.func @transform_7(%arg0: i32) -> (i32, i32) {
    %c0_i32 = arith.constant 0 : i32
    %c0_i32_0 = arith.constant 0 : i32
    %c0_i32_1 = arith.constant 0 : i32
    return %c0_i32, %c0_i32_0 : i32, i32
  }
  func.func @transform_8(%arg0: i32) -> (i32, i32) {
    %c0_i32 = arith.constant 0 : i32
    %c0_i32_0 = arith.constant 0 : i32
    %c0_i32_1 = arith.constant 0 : i32
    return %c0_i32, %c0_i32_0 : i32, i32
  }
  func.func @transform_9(%arg0: i32) -> (i32, i32) {
    %c0_i32 = arith.constant 0 : i32
    %c0_i32_0 = arith.constant 0 : i32
    %c0_i32_1 = arith.constant 0 : i32
    return %c0_i32, %c0_i32_0 : i32, i32
  }
  func.func @transform_10(%arg0: i32) -> (i32, i32) {
    %c0_i32 = arith.constant 0 : i32
    %c0_i32_0 = arith.constant 0 : i32
    %c0_i32_1 = arith.constant 0 : i32
    return %c0_i32, %c0_i32_0 : i32, i32
  }
  func.func @transform_11(%arg0: i32) -> (i32, i32) {
    %c0_i32 = arith.constant 0 : i32
    %c0_i32_0 = arith.constant 0 : i32
    return %arg0, %c0_i32 : i32, i32
  }
}

</mosaic_0001>

<llo_original>
// kernel: tpu_custom_call.1
$region0: #{tpu_custom_call.1}
  #allocation0 [shape = 'u32[]', space=smem, size = 0x4, offset = 0x4, fixed_abs, tag = 'smem constant byte address 0x4 - core index']
  #allocation1 [shape = 'u32[72,128]{1,0:T(1,128)}', space=vmem, size = 0x9000, scoped, tag = 'internal scratch']
  #allocation2 [shape = 'f32[1,1]{1,0:T(1,128)S(1)}', space=vmem, size = 0x200, scoped, tag = 'scoped memory for tpu_custom_call.1']
  %s0 = inlined_call_operand.vmem [shape: f32[2,9], index: 0, kind: input, shape index: {}]
  %s1 = inlined_call_operand.hbm [shape: f32[2,4096], index: 1, kind: input, shape index: {}]
  %s2 = inlined_call_operand.hbm [shape: f32[9,128], index: 2, kind: input, shape index: {}]
  %s3 = inlined_call_operand.vmem [shape: f32[1,128], index: 3, kind: input, shape index: {}]
  %s4 = inlined_call_operand.hbm [shape: bf16[4096,128], index: 4, kind: input, shape index: {}]
  %s5 = inlined_call_operand.vmem [shape: f32[1,128], index: 5, kind: input, shape index: {}]
  %s6 = inlined_call_operand.vmem [shape: f32[128,128], index: 6, kind: input, shape index: {}]
  %s7 = inlined_call_operand.hbm [shape: f32[128,128], index: 7, kind: input, shape index: {}]
  %s8 = inlined_call_operand.vmem [shape: f32[1,128], index: 8, kind: input, shape index: {}]
  %s9 = inlined_call_operand.vmem [shape: f32[128,1], index: 9, kind: input, shape index: {}]
  %s10 = inlined_call_operand.<no memory space> [shape: f32[1,1], index: 10, kind: input, shape index: {}]
  %s11 = inlined_call_operand.vmem [shape: f32[2,1], index: 11, kind: output, shape index: {}]
  %s12 = sld [smem:[#allocation0]]
  $region100: #{tpu_custom_call.1} parent=0
    _
  %s14 = ssub.s32 1, %s12
  %s15 = scalar_select 0, %s14, %s12
  %v16 = vstv %s10
  %17 = vst [vmem:[#allocation2] sm:$0x1] %v16
  $region1: #{tpu_custom_call.1} parent=0
    #allocation3 [shape = 'u8[131072]{0}', space=vmem, size = 0x20000, scoped, tag = 'input window, operand 1, single buffered']
    #allocation4 [shape = 's32[1]{0}', space=sflag, size = 0x4, scoped, tag = 'scoped memory for tpu_custom_call.1']
    #allocation5 [shape = 'u8[8192]{0}', space=vmem, size = 0x2000, scoped, tag = 'input window, operand 2, single buffered']
    #allocation6 [shape = 's32[1]{0}', space=sflag, size = 0x4, scoped, tag = 'scoped memory for tpu_custom_call.1']
    #allocation7 [shape = 'u8[1048576]{0}', space=vmem, size = 0x100000, scoped, tag = 'input window, operand 4, single buffered']
    #allocation8 [shape = 'u8[65536]{0}', space=vmem, size = 0x10000, scoped, tag = 'input window, operand 7, single buffered']
    #allocation9 [shape = 's32[1]{0}', space=sflag, size = 0x4, scoped, tag = 'scoped memory for tpu_custom_call.1']
    #allocation10 [shape = 'u8[4096]{0}', space=vmem, size = 0x1000, scoped, tag = 'output window, operand 0, single buffered']
    %18 = vsyncpa [#allocation4], 0
    %19 = vsyncpa [#allocation6], 0
    %20 = vsyncpa [#allocation9], 0
    // Predicated region
    $region2: #{tpu_custom_call.1} parent=1 // pred_check
      _
    $region3: #{tpu_custom_call.1} parent=1 // pred_check_branch
      %22 = sbr.rel (0) target = $region5
    $region4: #{tpu_custom_call.1} parent=1 // pred_region
      _
    $region5: #{tpu_custom_call.1} parent=1 // pred_fallthru
      _
    // Predicated region
    $region6: #{tpu_custom_call.1} parent=1 // pred_check
      _
    $region7: #{tpu_custom_call.1} parent=1 // pred_check_branch
      %24 = sbr.rel (0) target = $region9
    $region8: #{tpu_custom_call.1} parent=1 // pred_region
      %26 = vsyncadd [#allocation4], 3072
      %s27 = sshll.u32 %s1, 4
      %s28 = int_to_ptr.hbm [resolvable:$true] %s27
      %s29 = sshll.u32 [#allocation3], 4
      %s30 = int_to_ptr.vmem [resolvable:$true] %s29
      %35 = dma.hbm_to_vmem [thread:$0]  %s28, 1024, %s30, [#allocation4], 1024, 1024, 64
    $region9: #{tpu_custom_call.1} parent=1 // pred_fallthru
      _
    // Predicated region
    $region10: #{tpu_custom_call.1} parent=1 // pred_check
      _
    $region11: #{tpu_custom_call.1} parent=1 // pred_check_branch
      %37 = sbr.rel (0) target = $region13
    $region12: #{tpu_custom_call.1} parent=1 // pred_region
      %39 = vsyncadd [#allocation6], 0
      %s40 = sshll.u32 %s2, 4
      %s41 = int_to_ptr.hbm [resolvable:$true] %s40
      %s42 = sshll.u32 [#allocation5], 4
      %s43 = int_to_ptr.vmem [resolvable:$true] %s42
      %48 = dma.hbm_to_vmem [thread:$0]  %s41, 256, %s43, [#allocation6], 128, 128, 8
    $region13: #{tpu_custom_call.1} parent=1 // pred_fallthru
      _
    // Predicated region
    $region14: #{tpu_custom_call.1} parent=1 // pred_check
      _
    $region15: #{tpu_custom_call.1} parent=1 // pred_check_branch
      %50 = sbr.rel (0) target = $region17
    $region16: #{tpu_custom_call.1} parent=1 // pred_region
      _
    $region17: #{tpu_custom_call.1} parent=1 // pred_fallthru
      _
    // Predicated region
    $region18: #{tpu_custom_call.1} parent=1 // pred_check
      _
    $region19: #{tpu_custom_call.1} parent=1 // pred_check_branch
      %52 = sbr.rel (0) target = $region21
    $region20: #{tpu_custom_call.1} parent=1 // pred_region
      %54 = vsyncadd [#allocation6], 0
      %s55 = sshll.u32 %s4, 4
      %s56 = int_to_ptr.hbm [resolvable:$true] %s55
      %s57 = sshll.u32 [#allocation7], 4
      %s58 = int_to_ptr.vmem [resolvable:$true] %s57
      %63 = dma.hbm_to_vmem [thread:$0]  %s56, 32768, %s58, [#allocation6], 64, 64, 4
    $region21: #{tpu_custom_call.1} parent=1 // pred_fallthru
      _
    // Predicated region
    $region22: #{tpu_custom_call.1} parent=1 // pred_check
      _
    $region23: #{tpu_custom_call.1} parent=1 // pred_check_branch
      %65 = sbr.rel (0) target = $region25
    $region24: #{tpu_custom_call.1} parent=1 // pred_region
      _
    $region25: #{tpu_custom_call.1} parent=1 // pred_fallthru
      _
    // Predicated region
    $region26: #{tpu_custom_call.1} parent=1 // pred_check
      _
    $region27: #{tpu_custom_call.1} parent=1 // pred_check_branch
      %67 = sbr.rel (0) target = $region29
    $region28: #{tpu_custom_call.1} parent=1 // pred_region
      _
    $region29: #{tpu_custom_call.1} parent=1 // pred_fallthru
      _
    // Predicated region
    $region30: #{tpu_custom_call.1} parent=1 // pred_check
      _
    $region31: #{tpu_custom_call.1} parent=1 // pred_check_branch
      %69 = sbr.rel (0) target = $region33
    $region32: #{tpu_custom_call.1} parent=1 // pred_region
      %71 = vsyncadd [#allocation9], 0
      %s72 = sshll.u32 %s7, 4
      %s73 = int_to_ptr.hbm [resolvable:$true] %s72
      %s74 = sshll.u32 [#allocation8], 4
      %s75 = int_to_ptr.vmem [resolvable:$true] %s74
      %80 = dma.hbm_to_vmem [thread:$0]  %s73, 2048, %s75, [#allocation9], 128, 128, 8
    $region33: #{tpu_custom_call.1} parent=1 // pred_fallthru
      _
    // Predicated region
    $region34: #{tpu_custom_call.1} parent=1 // pred_check
      _
    $region35: #{tpu_custom_call.1} parent=1 // pred_check_branch
      %82 = sbr.rel (0) target = $region37
    $region36: #{tpu_custom_call.1} parent=1 // pred_region
      _
    $region37: #{tpu_custom_call.1} parent=1 // pred_fallthru
      _
    // Predicated region
    $region38: #{tpu_custom_call.1} parent=1 // pred_check
      _
    $region39: #{tpu_custom_call.1} parent=1 // pred_check_branch
      %84 = sbr.rel (0) target = $region41
    $region40: #{tpu_custom_call.1} parent=1 // pred_region
      _
    $region41: #{tpu_custom_call.1} parent=1 // pred_fallthru
      _
    // Predicated region
    $region42: #{tpu_custom_call.1} parent=1 // pred_check
      _
    $region43: #{tpu_custom_call.1} parent=1 // pred_check_branch
      %86 = sbr.rel (0) target = $region45
    $region44: #{tpu_custom_call.1} parent=1 // pred_region
      _
    $region45: #{tpu_custom_call.1} parent=1 // pred_fallthru
      _
    // Predicated region
    $region46: #{tpu_custom_call.1} parent=1 // pred_check
      _
    $region47: #{tpu_custom_call.1} parent=1 // pred_check_branch
      %88 = sbr.rel (0) target = $region49
    $region48: #{tpu_custom_call.1} parent=1 // pred_region
      %90 = dma.done [#allocation4], 4096
    $region49: #{tpu_custom_call.1} parent=1 // pred_fallthru
      _
    // Predicated region
    $region50: #{tpu_custom_call.1} parent=1 // pred_check
      _
    $region51: #{tpu_custom_call.1} parent=1 // pred_check_branch
      %92 = sbr.rel (0) target = $region53
    $region52: #{tpu_custom_call.1} parent=1 // pred_region
      %94 = dma.done [#allocation6], 256
    $region53: #{tpu_custom_call.1} parent=1 // pred_fallthru
      _
    // Predicated region
    $region54: #{tpu_custom_call.1} parent=1 // pred_check
      _
    $region55: #{tpu_custom_call.1} parent=1 // pred_check_branch
      %96 = sbr.rel (0) target = $region57
    $region56: #{tpu_custom_call.1} parent=1 // pred_region
      %98 = dma.done [#allocation6], 32768
    $region57: #{tpu_custom_call.1} parent=1 // pred_fallthru
      _
    // Predicated region
    $region58: #{tpu_custom_call.1} parent=1 // pred_check
      _
    $region59: #{tpu_custom_call.1} parent=1 // pred_check_branch
      %100 = sbr.rel (0) target = $region61
    $region60: #{tpu_custom_call.1} parent=1 // pred_region
      %102 = dma.done [#allocation9], 2048
    $region61: #{tpu_custom_call.1} parent=1 // pred_fallthru
      _
    %v103 = vld [vmem:[%s0] sm:$0xff]
    %v104 = vld [vmem:[#allocation5] sm:$0xff]
    %v105 = vld [vmem:[#allocation5 + $0x8] sm:$0x1]
    %v106 = vld [vmem:[%s3] sm:$0x1]
    %v108 = vperm.slane %v106, 0
    %vm110 = vcmask 72704
    %v112 = vsel %vm110, %v103, 0
    %vm114 = vcmask 1040384
    %v116 = vsel %vm114, %v105, 0
    %118 = vmatpush.msra.mxu0 0.0
    %119 = vmatpush.msra.mxu0 0.0
    %120 = vmatpush.msra.mxu0 0.0
    %121 = vmatpush.msra.mxu0 0.0
    %122 = vmatpush.msra.mxu0 0.0
    %123 = vmatpush.msra.mxu0 0.0
    %124 = vmatpush.msra.mxu0 0.0
    %125 = vmatpush.msra.mxu0 0.0
    %126 = vmatpush.msra.mxu0 0.0
    %127 = vmatpush.msra.mxu0 0.0
    %128 = vmatpush.msra.mxu0 0.0
    %129 = vmatpush.msra.mxu0 0.0
    %130 = vmatpush.msra.mxu0 0.0
    %131 = vmatpush.msra.mxu0 0.0
    %132 = vmatpush.msra.mxu0 %v116
    %133 = vmatpush.msra.mxu0 %v104
    %134 = vmatmul.f32.gmra.mxu0 %v112
    %v135 = vpop.f32.mrf.mxu0
    %v136 = vadd.f32 %v108, %v135
    %137 = vdwg.mxu0
    %v138 = vmax.f32 %v136, 0.0
    %v139 = vld [vmem:[#allocation3] sm:$0xff]
    %v140 = vld [vmem:[#allocation3 + $0x8] sm:$0xff]
    %v141 = vld [vmem:[#allocation3 + $0x10] sm:$0xff]
    %v142 = vld [vmem:[#allocation3 + $0x18] sm:$0xff]
    %v143 = vld [vmem:[#allocation3 + $0x20] sm:$0xff]
    %v144 = vld [vmem:[#allocation3 + $0x28] sm:$0xff]
    %v145 = vld [vmem:[#allocation3 + $0x30] sm:$0xff]
    %v146 = vld [vmem:[#allocation3 + $0x38] sm:$0xff]
    %v147 = vld [vmem:[#allocation3 + $0x40] sm:$0xff]
    %v148 = vld [vmem:[#allocation3 + $0x48] sm:$0xff]
    %v149 = vld [vmem:[#allocation3 + $0x50] sm:$0xff]
    %v150 = vld [vmem:[#allocation3 + $0x58] sm:$0xff]
    %v151 = vld [vmem:[#allocation3 + $0x60] sm:$0xff]
    %v152 = vld [vmem:[#allocation3 + $0x68] sm:$0xff]
    %v153 = vld [vmem:[#allocation3 + $0x70] sm:$0xff]
    %v154 = vld [vmem:[#allocation3 + $0x78] sm:$0xff]
    %v155 = vld [vmem:[#allocation3 + $0x80] sm:$0xff]
    %v156 = vld [vmem:[#allocation3 + $0x88] sm:$0xff]
    %v157 = vld [vmem:[#allocation3 + $0x90] sm:$0xff]
    %v158 = vld [vmem:[#allocation3 + $0x98] sm:$0xff]
    %v159 = vld [vmem:[#allocation3 + $0xa0] sm:$0xff]
    %v160 = vld [vmem:[#allocation3 + $0xa8] sm:$0xff]
    %v161 = vld [vmem:[#allocation3 + $0xb0] sm:$0xff]
    %v162 = vld [vmem:[#allocation3 + $0xb8] sm:$0xff]
    %v163 = vld [vmem:[#allocation3 + $0xc0] sm:$0xff]
    %v164 = vld [vmem:[#allocation3 + $0xc8] sm:$0xff]
    %v165 = vld [vmem:[#allocation3 + $0xd0] sm:$0xff]
    %v166 = vld [vmem:[#allocation3 + $0xd8] sm:$0xff]
    %v167 = vld [vmem:[#allocation3 + $0xe0] sm:$0xff]
    %v168 = vld [vmem:[#allocation3 + $0xe8] sm:$0xff]
    %v169 = vld [vmem:[#allocation3 + $0xf0] sm:$0xff]
    %v170 = vld [vmem:[#allocation3 + $0xf8] sm:$0xff]
    %203 = vst [vmem:[#allocation1] ss:$4 sm:$0xff] %v139
    %s204 = scalar_lea.vmem [#allocation1], 1
    %205 = vst [vmem:[%s204] ss:$4 sm:$0xff] %v147
    %s206 = scalar_lea.vmem [#allocation1], 2
    %207 = vst [vmem:[%s206] ss:$4 sm:$0xff] %v155
    %s208 = scalar_lea.vmem [#allocation1], 3
    %209 = vst [vmem:[%s208] ss:$4 sm:$0xff] %v163
    %s210 = scalar_lea.vmem [#allocation1], 32
    %211 = vst [vmem:[%s210] ss:$4 sm:$0xff] %v140
    %s212 = scalar_lea.vmem [#allocation1], 33
    %213 = vst [vmem:[%s212] ss:$4 sm:$0xff] %v148
    %s214 = scalar_lea.vmem [#allocation1], 34
    %215 = vst [vmem:[%s214] ss:$4 sm:$0xff] %v156
    %s216 = scalar_lea.vmem [#allocation1], 35
    %217 = vst [vmem:[%s216] ss:$4 sm:$0xff] %v164
    %v218 = vld.sshfl [vmem:[#allocation1] sm:$0xff pattern:$0x73625140]
    %v219 = vld.sshfl [vmem:[#allocation1 + $0x8] sm:$0xff pattern:$0x73625140]
    %v220 = vld.sshfl [vmem:[#allocation1 + $0x10] sm:$0xff pattern:$0x73625140]
    %v221 = vld.sshfl [vmem:[#allocation1 + $0x18] sm:$0xff pattern:$0x73625140]
    %v222 = vld.sshfl [vmem:[#allocation1 + $0x20] sm:$0xff pattern:$0x73625140]
    %v223 = vld.sshfl [vmem:[#allocation1 + $0x28] sm:$0xff pattern:$0x73625140]
    %v224 = vld.sshfl [vmem:[#allocation1 + $0x30] sm:$0xff pattern:$0x73625140]
    %v225 = vld.sshfl [vmem:[#allocation1 + $0x38] sm:$0xff pattern:$0x73625140]
    %226 = vst [vmem:[#allocation1] ss:$4 sm:$0xff] %v141
    %227 = vst [vmem:[%s204] ss:$4 sm:$0xff] %v149
    %228 = vst [vmem:[%s206] ss:$4 sm:$0xff] %v157
    %229 = vst [vmem:[%s208] ss:$4 sm:$0xff] %v165
    %230 = vst [vmem:[%s210] ss:$4 sm:$0xff] %v142
    %231 = vst [vmem:[%s212] ss:$4 sm:$0xff] %v150
    %232 = vst [vmem:[%s214] ss:$4 sm:$0xff] %v158
    %233 = vst [vmem:[%s216] ss:$4 sm:$0xff] %v166
    %v234 = vld.sshfl [vmem:[#allocation1] sm:$0xff pattern:$0x73625140]
    %v235 = vld.sshfl [vmem:[#allocation1 + $0x8] sm:$0xff pattern:$0x73625140]
    %v236 = vld.sshfl [vmem:[#allocation1 + $0x10] sm:$0xff pattern:$0x73625140]
    %v237 = vld.sshfl [vmem:[#allocation1 + $0x18] sm:$0xff pattern:$0x73625140]
    %v238 = vld.sshfl [vmem:[#allocation1 + $0x20] sm:$0xff pattern:$0x73625140]
    %v239 = vld.sshfl [vmem:[#allocation1 + $0x28] sm:$0xff pattern:$0x73625140]
    %v240 = vld.sshfl [vmem:[#allocation1 + $0x30] sm:$0xff pattern:$0x73625140]
    %v241 = vld.sshfl [vmem:[#allocation1 + $0x38] sm:$0xff pattern:$0x73625140]
    %242 = vst [vmem:[#allocation1] ss:$4 sm:$0xff] %v143
    %243 = vst [vmem:[%s204] ss:$4 sm:$0xff] %v151
    %244 = vst [vmem:[%s206] ss:$4 sm:$0xff] %v159
    %245 = vst [vmem:[%s208] ss:$4 sm:$0xff] %v167
    %246 = vst [vmem:[%s210] ss:$4 sm:$0xff] %v144
    %247 = vst [vmem:[%s212] ss:$4 sm:$0xff] %v152
    %248 = vst [vmem:[%s214] ss:$4 sm:$0xff] %v160
    %249 = vst [vmem:[%s216] ss:$4 sm:$0xff] %v168
    %v250 = vld.sshfl [vmem:[#allocation1] sm:$0xff pattern:$0x73625140]
    %v251 = vld.sshfl [vmem:[#allocation1 + $0x8] sm:$0xff pattern:$0x73625140]
    %v252 = vld.sshfl [vmem:[#allocation1 + $0x10] sm:$0xff pattern:$0x73625140]
    %v253 = vld.sshfl [vmem:[#allocation1 + $0x18] sm:$0xff pattern:$0x73625140]
    %v254 = vld.sshfl [vmem:[#allocation1 + $0x20] sm:$0xff pattern:$0x73625140]
    %v255 = vld.sshfl [vmem:[#allocation1 + $0x28] sm:$0xff pattern:$0x73625140]
    %v256 = vld.sshfl [vmem:[#allocation1 + $0x30] sm:$0xff pattern:$0x73625140]
    %v257 = vld.sshfl [vmem:[#allocation1 + $0x38] sm:$0xff pattern:$0x73625140]
    %258 = vst [vmem:[#allocation1] ss:$4 sm:$0xff] %v145
    %259 = vst [vmem:[%s204] ss:$4 sm:$0xff] %v153
    %260 = vst [vmem:[%s206] ss:$4 sm:$0xff] %v161
    %261 = vst [vmem:[%s208] ss:$4 sm:$0xff] %v169
    %262 = vst [vmem:[%s210] ss:$4 sm:$0xff] %v146
    %263 = vst [vmem:[%s212] ss:$4 sm:$0xff] %v154
    %264 = vst [vmem:[%s214] ss:$4 sm:$0xff] %v162
    %265 = vst [vmem:[%s216] ss:$4 sm:$0xff] %v170
    %v266 = vld.sshfl [vmem:[#allocation1] sm:$0xff pattern:$0x73625140]
    %v267 = vld.sshfl [vmem:[#allocation1 + $0x8] sm:$0xff pattern:$0x73625140]
    %v268 = vld.sshfl [vmem:[#allocation1 + $0x10] sm:$0xff pattern:$0x73625140]
    %v269 = vld.sshfl [vmem:[#allocation1 + $0x18] sm:$0xff pattern:$0x73625140]
    %v270 = vld.sshfl [vmem:[#allocation1 + $0x20] sm:$0xff pattern:$0x73625140]
    %v271 = vld.sshfl [vmem:[#allocation1 + $0x28] sm:$0xff pattern:$0x73625140]
    %v272 = vld.sshfl [vmem:[#allocation1 + $0x30] sm:$0xff pattern:$0x73625140]
    %v273 = vld.sshfl [vmem:[#allocation1 + $0x38] sm:$0xff pattern:$0x73625140]
    %v306 = vpack.c.bf16 %v218, %v218
    %v307 = vpack.c.bf16 %v219, %v219
    %v308 = vpack.c.bf16 %v220, %v220
    %v309 = vpack.c.bf16 %v221, %v221
    %v310 = vpack.c.bf16 %v222, %v222
    %v311 = vpack.c.bf16 %v223, %v223
    %v312 = vpack.c.bf16 %v224, %v224
    %v313 = vpack.c.bf16 %v225, %v225
    %v314 = vpack.c.bf16 %v234, %v234
    %v315 = vpack.c.bf16 %v235, %v235
    %v316 = vpack.c.bf16 %v236, %v236
    %v317 = vpack.c.bf16 %v237, %v237
    %v318 = vpack.c.bf16 %v238, %v238
    %v319 = vpack.c.bf16 %v239, %v239
    %v320 = vpack.c.bf16 %v240, %v240
    %v321 = vpack.c.bf16 %v241, %v241
    %v322 = vpack.c.bf16 %v250, %v250
    %v323 = vpack.c.bf16 %v251, %v251
    %v324 = vpack.c.bf16 %v252, %v252
    %v325 = vpack.c.bf16 %v253, %v253
    %v326 = vpack.c.bf16 %v254, %v254
    %v327 = vpack.c.bf16 %v255, %v255
    %v328 = vpack.c.bf16 %v256, %v256
    %v329 = vpack.c.bf16 %v257, %v257
    %v330 = vpack.c.bf16 %v266, %v266
    %v331 = vpack.c.bf16 %v267, %v267
    %v332 = vpack.c.bf16 %v268, %v268
    %v333 = vpack.c.bf16 %v269, %v269
    %v334 = vpack.c.bf16 %v270, %v270
    %v335 = vpack.c.bf16 %v271, %v271
    %v336 = vpack.c.bf16 %v272, %v272
    %v337 = vpack.c.bf16 %v273, %v273
    %v338 = vld [vmem:[#allocation7] sm:$0xf]
    %v339 = vld [vmem:[#allocation7 + $0x4] sm:$0xf]
    %v340 = vld [vmem:[#allocation7 + $0x8] sm:$0xf]
    %v341 = vld [vmem:[#allocation7 + $0xc] sm:$0xf]
    %v342 = vld [vmem:[#allocation7 + $0x10] sm:$0xf]
    %v343 = vld [vmem:[#allocation7 + $0x14] sm:$0xf]
    %v344 = vld [vmem:[#allocation7 + $0x18] sm:$0xf]
    %v345 = vld [vmem:[#allocation7 + $0x1c] sm:$0xf]
    %v346 = vld [vmem:[#allocation7 + $0x20] sm:$0xf]
    %v347 = vld [vmem:[#allocation7 + $0x24] sm:$0xf]
    %v348 = vld [vmem:[#allocation7 + $0x28] sm:$0xf]
    %v349 = vld [vmem:[#allocation7 + $0x2c] sm:$0xf]
    %v350 = vld [vmem:[#allocation7 + $0x30] sm:$0xf]
    %v351 = vld [vmem:[#allocation7 + $0x34] sm:$0xf]
    %v352 = vld [vmem:[#allocation7 + $0x38] sm:$0xf]
    %v353 = vld [vmem:[#allocation7 + $0x3c] sm:$0xf]
    %v354 = vld [vmem:[#allocation7 + $0x40] sm:$0xf]
    %v355 = vld [vmem:[#allocation7 + $0x44] sm:$0xf]
    %v356 = vld [vmem:[#allocation7 + $0x48] sm:$0xf]
    %v357 = vld [vmem:[#allocation7 + $0x4c] sm:$0xf]
    %v358 = vld [vmem:[#allocation7 + $0x50] sm:$0xf]
    %v359 = vld [vmem:[#allocation7 + $0x54] sm:$0xf]
    %v360 = vld [vmem:[#allocation7 + $0x58] sm:$0xf]
    %v361 = vld [vmem:[#allocation7 + $0x5c] sm:$0xf]
    %v362 = vld [vmem:[#allocation7 + $0x60] sm:$0xf]
    %v363 = vld [vmem:[#allocation7 + $0x64] sm:$0xf]
    %v364 = vld [vmem:[#allocation7 + $0x68] sm:$0xf]
    %v365 = vld [vmem:[#allocation7 + $0x6c] sm:$0xf]
    %v366 = vld [vmem:[#allocation7 + $0x70] sm:$0xf]
    %v367 = vld [vmem:[#allocation7 + $0x74] sm:$0xf]
    %v368 = vld [vmem:[#allocation7 + $0x78] sm:$0xf]
    %v369 = vld [vmem:[#allocation7 + $0x7c] sm:$0xf]
    %v370 = vld [vmem:[#allocation7 + $0x80] sm:$0xf]
    %v371 = vld [vmem:[#allocation7 + $0x84] sm:$0xf]
    %v372 = vld [vmem:[#allocation7 + $0x88] sm:$0xf]
    %v373 = vld [vmem:[#allocation7 + $0x8c] sm:$0xf]
    %v374 = vld [vmem:[#allocation7 + $0x90] sm:$0xf]
    %v375 = vld [vmem:[#allocation7 + $0x94] sm:$0xf]
    %v376 = vld [vmem:[#allocation7 + $0x98] sm:$0xf]
    %v377 = vld [vmem:[#allocation7 + $0x9c] sm:$0xf]
    %v378 = vld [vmem:[#allocation7 + $0xa0] sm:$0xf]
    %v379 = vld [vmem:[#allocation7 + $0xa4] sm:$0xf]
    %v380 = vld [vmem:[#allocation7 + $0xa8] sm:$0xf]
    %v381 = vld [vmem:[#allocation7 + $0xac] sm:$0xf]
    %v382 = vld [vmem:[#allocation7 + $0xb0] sm:$0xf]
    %v383 = vld [vmem:[#allocation7 + $0xb4] sm:$0xf]
    %v384 = vld [vmem:[#allocation7 + $0xb8] sm:$0xf]
    %v385 = vld [vmem:[#allocation7 + $0xbc] sm:$0xf]
    %v386 = vld [vmem:[#allocation7 + $0xc0] sm:$0xf]
    %v387 = vld [vmem:[#allocation7 + $0xc4] sm:$0xf]
    %v388 = vld [vmem:[#allocation7 + $0xc8] sm:$0xf]
    %v389 = vld [vmem:[#allocation7 + $0xcc] sm:$0xf]
    %v390 = vld [vmem:[#allocation7 + $0xd0] sm:$0xf]
    %v391 = vld [vmem:[#allocation7 + $0xd4] sm:$0xf]
    %v392 = vld [vmem:[#allocation7 + $0xd8] sm:$0xf]
    %v393 = vld [vmem:[#allocation7 + $0xdc] sm:$0xf]
    %v394 = vld [vmem:[#allocation7 + $0xe0] sm:$0xf]
    %v395 = vld [vmem:[#allocation7 + $0xe4] sm:$0xf]
    %v396 = vld [vmem:[#allocation7 + $0xe8] sm:$0xf]
    %v397 = vld [vmem:[#allocation7 + $0xec] sm:$0xf]
    %v398 = vld [vmem:[#allocation7 + $0xf0] sm:$0xf]
    %v399 = vld [vmem:[#allocation7 + $0xf4] sm:$0xf]
    %v400 = vld [vmem:[#allocation7 + $0xf8] sm:$0xf]
    %v401 = vld [vmem:[#allocation7 + $0xfc] sm:$0xf]
    %v402 = vld [vmem:[#allocation7 + $0x100] sm:$0xf]
    %v403 = vld [vmem:[#allocation7 + $0x104] sm:$0xf]
    %v404 = vld [vmem:[#allocation7 + $0x108] sm:$0xf]
    %v405 = vld [vmem:[#allocation7 + $0x10c] sm:$0xf]
    %v406 = vld [vmem:[#allocation7 + $0x110] sm:$0xf]
    %v407 = vld [vmem:[#allocation7 + $0x114] sm:$0xf]
    %v408 = vld [vmem:[#allocation7 + $0x118] sm:$0xf]
    %v409 = vld [vmem:[#allocation7 + $0x11c] sm:$0xf]
    %v410 = vld [vmem:[#allocation7 + $0x120] sm:$0xf]
    %v411 = vld [vmem:[#allocation7 + $0x124] sm:$0xf]
    %v412 = vld [vmem:[#allocation7 + $0x128] sm:$0xf]
    %v413 = vld [vmem:[#allocation7 + $0x12c] sm:$0xf]
    %v414 = vld [vmem:[#allocation7 + $0x130] sm:$0xf]
    %v415 = vld [vmem:[#allocation7 + $0x134] sm:$0xf]
    %v416 = vld [vmem:[#allocation7 + $0x138] sm:$0xf]
    %v417 = vld [vmem:[#allocation7 + $0x13c] sm:$0xf]
    %v418 = vld [vmem:[#allocation7 + $0x140] sm:$0xf]
    %v419 = vld [vmem:[#allocation7 + $0x144] sm:$0xf]
    %v420 = vld [vmem:[#allocation7 + $0x148] sm:$0xf]
    %v421 = vld [vmem:[#allocation7 + $0x14c] sm:$0xf]
    %v422 = vld [vmem:[#allocation7 + $0x150] sm:$0xf]
    %v423 = vld [vmem:[#allocation7 + $0x154] sm:$0xf]
    %v424 = vld [vmem:[#allocation7 + $0x158] sm:$0xf]
    %v425 = vld [vmem:[#allocation7 + $0x15c] sm:$0xf]
    %v426 = vld [vmem:[#allocation7 + $0x160] sm:$0xf]
    %v427 = vld [vmem:[#allocation7 + $0x164] sm:$0xf]
    %v428 = vld [vmem:[#allocation7 + $0x168] sm:$0xf]
    %v429 = vld [vmem:[#allocation7 + $0x16c] sm:$0xf]
    %v430 = vld [vmem:[#allocation7 + $0x170] sm:$0xf]
    %v431 = vld [vmem:[#allocation7 + $0x174] sm:$0xf]
    %v432 = vld [vmem:[#allocation7 + $0x178] sm:$0xf]
    %v433 = vld [vmem:[#allocation7 + $0x17c] sm:$0xf]
    %v434 = vld [vmem:[#allocation7 + $0x180] sm:$0xf]
    %v435 = vld [vmem:[#allocation7 + $0x184] sm:$0xf]
    %v436 = vld [vmem:[#allocation7 + $0x188] sm:$0xf]
    %v437 = vld [vmem:[#allocation7 + $0x18c] sm:$0xf]
    %v438 = vld [vmem:[#allocation7 + $0x190] sm:$0xf]
    %v439 = vld [vmem:[#allocation7 + $0x194] sm:$0xf]
    %v440 = vld [vmem:[#allocation7 + $0x198] sm:$0xf]
    %v441 = vld [vmem:[#allocation7 + $0x19c] sm:$0xf]
    %v442 = vld [vmem:[#allocation7 + $0x1a0] sm:$0xf]
    %v443 = vld [vmem:[#allocation7 + $0x1a4] sm:$0xf]
    %v444 = vld [vmem:[#allocation7 + $0x1a8] sm:$0xf]
    %v445 = vld [vmem:[#allocation7 + $0x1ac] sm:$0xf]
    %v446 = vld [vmem:[#allocation7 + $0x1b0] sm:$0xf]
    %v447 = vld [vmem:[#allocation7 + $0x1b4] sm:$0xf]
    %v448 = vld [vmem:[#allocation7 + $0x1b8] sm:$0xf]
    %v449 = vld [vmem:[#allocation7 + $0x1bc] sm:$0xf]
    %v450 = vld [vmem:[#allocation7 + $0x1c0] sm:$0xf]
    %v451 = vld [vmem:[#allocation7 + $0x1c4] sm:$0xf]
    %v452 = vld [vmem:[#allocation7 + $0x1c8] sm:$0xf]
    %v453 = vld [vmem:[#allocation7 + $0x1cc] sm:$0xf]
    %v454 = vld [vmem:[#allocation7 + $0x1d0] sm:$0xf]
    %v455 = vld [vmem:[#allocation7 + $0x1d4] sm:$0xf]
    %v456 = vld [vmem:[#allocation7 + $0x1d8] sm:$0xf]
    %v457 = vld [vmem:[#allocation7 + $0x1dc] sm:$0xf]
    %v458 = vld [vmem:[#allocation7 + $0x1e0] sm:$0xf]
    %v459 = vld [vmem:[#allocation7 + $0x1e4] sm:$0xf]
    %v460 = vld [vmem:[#allocation7 + $0x1e8] sm:$0xf]
    %v461 = vld [vmem:[#allocation7 + $0x1ec] sm:$0xf]
    %v462 = vld [vmem:[#allocation7 + $0x1f0] sm:$0xf]
    %v463 = vld [vmem:[#allocation7 + $0x1f4] sm:$0xf]
    %v464 = vld [vmem:[#allocation7 + $0x1f8] sm:$0xf]
    %v465 = vld [vmem:[#allocation7 + $0x1fc] sm:$0xf]
    %v466 = vld [vmem:[#allocation7 + $0x200] sm:$0xf]
    %v467 = vld [vmem:[#allocation7 + $0x204] sm:$0xf]
    %v468 = vld [vmem:[#allocation7 + $0x208] sm:$0xf]
    %v469 = vld [vmem:[#allocation7 + $0x20c] sm:$0xf]
    %v470 = vld [vmem:[#allocation7 + $0x210] sm:$0xf]
    %v471 = vld [vmem:[#allocation7 + $0x214] sm:$0xf]
    %v472 = vld [vmem:[#allocation7 + $0x218] sm:$0xf]
    %v473 = vld [vmem:[#allocation7 + $0x21c] sm:$0xf]
    %v474 = vld [vmem:[#allocation7 + $0x220] sm:$0xf]
    %v475 = vld [vmem:[#allocation7 + $0x224] sm:$0xf]
    %v476 = vld [vmem:[#allocation7 + $0x228] sm:$0xf]
    %v477 = vld [vmem:[#allocation7 + $0x22c] sm:$0xf]
    %v478 = vld [vmem:[#allocation7 + $0x230] sm:$0xf]
    %v479 = vld [vmem:[#allocation7 + $0x234] sm:$0xf]
    %v480 = vld [vmem:[#allocation7 + $0x238] sm:$0xf]
    %v481 = vld [vmem:[#allocation7 + $0x23c] sm:$0xf]
    %v482 = vld [vmem:[#allocation7 + $0x240] sm:$0xf]
    %v483 = vld [vmem:[#allocation7 + $0x244] sm:$0xf]
    %v484 = vld [vmem:[#allocation7 + $0x248] sm:$0xf]
    %v485 = vld [vmem:[#allocation7 + $0x24c] sm:$0xf]
    %v486 = vld [vmem:[#allocation7 + $0x250] sm:$0xf]
    %v487 = vld [vmem:[#allocation7 + $0x254] sm:$0xf]
    %v488 = vld [vmem:[#allocation7 + $0x258] sm:$0xf]
    %v489 = vld [vmem:[#allocation7 + $0x25c] sm:$0xf]
    %v490 = vld [vmem:[#allocation7 + $0x260] sm:$0xf]
    %v491 = vld [vmem:[#allocation7 + $0x264] sm:$0xf]
    %v492 = vld [vmem:[#allocation7 + $0x268] sm:$0xf]
    %v493 = vld [vmem:[#allocation7 + $0x26c] sm:$0xf]
    %v494 = vld [vmem:[#allocation7 + $0x270] sm:$0xf]
    %v495 = vld [vmem:[#allocation7 + $0x274] sm:$0xf]
    %v496 = vld [vmem:[#allocation7 + $0x278] sm:$0xf]
    %v497 = vld [vmem:[#allocation7 + $0x27c] sm:$0xf]
    %v498 = vld [vmem:[#allocation7 + $0x280] sm:$0xf]
    %v499 = vld [vmem:[#allocation7 + $0x284] sm:$0xf]
    %v500 = vld [vmem:[#allocation7 + $0x288] sm:$0xf]
    %v501 = vld [vmem:[#allocation7 + $0x28c] sm:$0xf]
    %v502 = vld [vmem:[#allocation7 + $0x290] sm:$0xf]
    %v503 = vld [vmem:[#allocation7 + $0x294] sm:$0xf]
    %v504 = vld [vmem:[#allocation7 + $0x298] sm:$0xf]
    %v505 = vld [vmem:[#allocation7 + $0x29c] sm:$0xf]
    %v506 = vld [vmem:[#allocation7 + $0x2a0] sm:$0xf]
    %v507 = vld [vmem:[#allocation7 + $0x2a4] sm:$0xf]
    %v508 = vld [vmem:[#allocation7 + $0x2a8] sm:$0xf]
    %v509 = vld [vmem:[#allocation7 + $0x2ac] sm:$0xf]
    %v510 = vld [vmem:[#allocation7 + $0x2b0] sm:$0xf]
    %v511 = vld [vmem:[#allocation7 + $0x2b4] sm:$0xf]
    %v512 = vld [vmem:[#allocation7 + $0x2b8] sm:$0xf]
    %v513 = vld [vmem:[#allocation7 + $0x2bc] sm:$0xf]
    %v514 = vld [vmem:[#allocation7 + $0x2c0] sm:$0xf]
    %v515 = vld [vmem:[#allocation7 + $0x2c4] sm:$0xf]
    %v516 = vld [vmem:[#allocation7 + $0x2c8] sm:$0xf]
    %v517 = vld [vmem:[#allocation7 + $0x2cc] sm:$0xf]
    %v518 = vld [vmem:[#allocation7 + $0x2d0] sm:$0xf]
    %v519 = vld [vmem:[#allocation7 + $0x2d4] sm:$0xf]
    %v520 = vld [vmem:[#allocation7 + $0x2d8] sm:$0xf]
    %v521 = vld [vmem:[#allocation7 + $0x2dc] sm:$0xf]
    %v522 = vld [vmem:[#allocation7 + $0x2e0] sm:$0xf]
    %v523 = vld [vmem:[#allocation7 + $0x2e4] sm:$0xf]
    %v524 = vld [vmem:[#allocation7 + $0x2e8] sm:$0xf]
    %v525 = vld [vmem:[#allocation7 + $0x2ec] sm:$0xf]
    %v526 = vld [vmem:[#allocation7 + $0x2f0] sm:$0xf]
    %v527 = vld [vmem:[#allocation7 + $0x2f4] sm:$0xf]
    %v528 = vld [vmem:[#allocation7 + $0x2f8] sm:$0xf]
    %v529 = vld [vmem:[#allocation7 + $0x2fc] sm:$0xf]
    %v530 = vld [vmem:[#allocation7 + $0x300] sm:$0xf]
    %v531 = vld [vmem:[#allocation7 + $0x304] sm:$0xf]
    %v532 = vld [vmem:[#allocation7 + $0x308] sm:$0xf]
    %v533 = vld [vmem:[#allocation7 + $0x30c] sm:$0xf]
    %v534 = vld [vmem:[#allocation7 + $0x310] sm:$0xf]
    %v535 = vld [vmem:[#allocation7 + $0x314] sm:$0xf]
    %v536 = vld [vmem:[#allocation7 + $0x318] sm:$0xf]
    %v537 = vld [vmem:[#allocation7 + $0x31c] sm:$0xf]
    %v538 = vld [vmem:[#allocation7 + $0x320] sm:$0xf]
    %v539 = vld [vmem:[#allocation7 + $0x324] sm:$0xf]
    %v540 = vld [vmem:[#allocation7 + $0x328] sm:$0xf]
    %v541 = vld [vmem:[#allocation7 + $0x32c] sm:$0xf]
    %v542 = vld [vmem:[#allocation7 + $0x330] sm:$0xf]
    %v543 = vld [vmem:[#allocation7 + $0x334] sm:$0xf]
    %v544 = vld [vmem:[#allocation7 + $0x338] sm:$0xf]
    %v545 = vld [vmem:[#allocation7 + $0x33c] sm:$0xf]
    %v546 = vld [vmem:[#allocation7 + $0x340] sm:$0xf]
    %v547 = vld [vmem:[#allocation7 + $0x344] sm:$0xf]
    %v548 = vld [vmem:[#allocation7 + $0x348] sm:$0xf]
    %v549 = vld [vmem:[#allocation7 + $0x34c] sm:$0xf]
    %v550 = vld [vmem:[#allocation7 + $0x350] sm:$0xf]
    %v551 = vld [vmem:[#allocation7 + $0x354] sm:$0xf]
    %v552 = vld [vmem:[#allocation7 + $0x358] sm:$0xf]
    %v553 = vld [vmem:[#allocation7 + $0x35c] sm:$0xf]
    %v554 = vld [vmem:[#allocation7 + $0x360] sm:$0xf]
    %v555 = vld [vmem:[#allocation7 + $0x364] sm:$0xf]
    %v556 = vld [vmem:[#allocation7 + $0x368] sm:$0xf]
    %v557 = vld [vmem:[#allocation7 + $0x36c] sm:$0xf]
    %v558 = vld [vmem:[#allocation7 + $0x370] sm:$0xf]
    %v559 = vld [vmem:[#allocation7 + $0x374] sm:$0xf]
    %v560 = vld [vmem:[#allocation7 + $0x378] sm:$0xf]
    %v561 = vld [vmem:[#allocation7 + $0x37c] sm:$0xf]
    %v562 = vld [vmem:[#allocation7 + $0x380] sm:$0xf]
    %v563 = vld [vmem:[#allocation7 + $0x384] sm:$0xf]
    %v564 = vld [vmem:[#allocation7 + $0x388] sm:$0xf]
    %v565 = vld [vmem:[#allocation7 + $0x38c] sm:$0xf]
    %v566 = vld [vmem:[#allocation7 + $0x390] sm:$0xf]
    %v567 = vld [vmem:[#allocation7 + $0x394] sm:$0xf]
    %v568 = vld [vmem:[#allocation7 + $0x398] sm:$0xf]
    %v569 = vld [vmem:[#allocation7 + $0x39c] sm:$0xf]
    %v570 = vld [vmem:[#allocation7 + $0x3a0] sm:$0xf]
    %v571 = vld [vmem:[#allocation7 + $0x3a4] sm:$0xf]
    %v572 = vld [vmem:[#allocation7 + $0x3a8] sm:$0xf]
    %v573 = vld [vmem:[#allocation7 + $0x3ac] sm:$0xf]
    %v574 = vld [vmem:[#allocation7 + $0x3b0] sm:$0xf]
    %v575 = vld [vmem:[#allocation7 + $0x3b4] sm:$0xf]
    %v576 = vld [vmem:[#allocation7 + $0x3b8] sm:$0xf]
    %v577 = vld [vmem:[#allocation7 + $0x3bc] sm:$0xf]
    %v578 = vld [vmem:[#allocation7 + $0x3c0] sm:$0xf]
    %v579 = vld [vmem:[#allocation7 + $0x3c4] sm:$0xf]
    %v580 = vld [vmem:[#allocation7 + $0x3c8] sm:$0xf]
    %v581 = vld [vmem:[#allocation7 + $0x3cc] sm:$0xf]
    %v582 = vld [vmem:[#allocation7 + $0x3d0] sm:$0xf]
    %v583 = vld [vmem:[#allocation7 + $0x3d4] sm:$0xf]
    %v584 = vld [vmem:[#allocation7 + $0x3d8] sm:$0xf]
    %v585 = vld [vmem:[#allocation7 + $0x3dc] sm:$0xf]
    %v586 = vld [vmem:[#allocation7 + $0x3e0] sm:$0xf]
    %v587 = vld [vmem:[#allocation7 + $0x3e4] sm:$0xf]
    %v588 = vld [vmem:[#allocation7 + $0x3e8] sm:$0xf]
    %v589 = vld [vmem:[#allocation7 + $0x3ec] sm:$0xf]
    %v590 = vld [vmem:[#allocation7 + $0x3f0] sm:$0xf]
    %v591 = vld [vmem:[#allocation7 + $0x3f4] sm:$0xf]
    %v592 = vld [vmem:[#allocation7 + $0x3f8] sm:$0xf]
    %v593 = vld [vmem:[#allocation7 + $0x3fc] sm:$0xf]
    %v594 = vld [vmem:[#allocation7 + $0x400] sm:$0xf]
    %v595 = vld [vmem:[#allocation7 + $0x404] sm:$0xf]
    %v596 = vld [vmem:[#allocation7 + $0x408] sm:$0xf]
    %v597 = vld [vmem:[#allocation7 + $0x40c] sm:$0xf]
    %v598 = vld [vmem:[#allocation7 + $0x410] sm:$0xf]
    %v599 = vld [vmem:[#allocation7 + $0x414] sm:$0xf]
    %v600 = vld [vmem:[#allocation7 + $0x418] sm:$0xf]
    %v601 = vld [vmem:[#allocation7 + $0x41c] sm:$0xf]
    %v602 = vld [vmem:[#allocation7 + $0x420] sm:$0xf]
    %v603 = vld [vmem:[#allocation7 + $0x424] sm:$0xf]
    %v604 = vld [vmem:[#allocation7 + $0x428] sm:$0xf]
    %v605 = vld [vmem:[#allocation7 + $0x42c] sm:$0xf]
    %v606 = vld [vmem:[#allocation7 + $0x430] sm:$0xf]
    %v607 = vld [vmem:[#allocation7 + $0x434] sm:$0xf]
    %v608 = vld [vmem:[#allocation7 + $0x438] sm:$0xf]
    %v609 = vld [vmem:[#allocation7 + $0x43c] sm:$0xf]
    %v610 = vld [vmem:[#allocation7 + $0x440] sm:$0xf]
    %v611 = vld [vmem:[#allocation7 + $0x444] sm:$0xf]
    %v612 = vld [vmem:[#allocation7 + $0x448] sm:$0xf]
    %v613 = vld [vmem:[#allocation7 + $0x44c] sm:$0xf]
    %v614 = vld [vmem:[#allocation7 + $0x450] sm:$0xf]
    %v615 = vld [vmem:[#allocation7 + $0x454] sm:$0xf]
    %v616 = vld [vmem:[#allocation7 + $0x458] sm:$0xf]
    %v617 = vld [vmem:[#allocation7 + $0x45c] sm:$0xf]
    %v618 = vld [vmem:[#allocation7 + $0x460] sm:$0xf]
    %v619 = vld [vmem:[#allocation7 + $0x464] sm:$0xf]
    %v620 = vld [vmem:[#allocation7 + $0x468] sm:$0xf]
    %v621 = vld [vmem:[#allocation7 + $0x46c] sm:$0xf]
    %v622 = vld [vmem:[#allocation7 + $0x470] sm:$0xf]
    %v623 = vld [vmem:[#allocation7 + $0x474] sm:$0xf]
    %v624 = vld [vmem:[#allocation7 + $0x478] sm:$0xf]
    %v625 = vld [vmem:[#allocation7 + $0x47c] sm:$0xf]
    %v626 = vld [vmem:[#allocation7 + $0x480] sm:$0xf]
    %v627 = vld [vmem:[#allocation7 + $0x484] sm:$0xf]
    %v628 = vld [vmem:[#allocation7 + $0x488] sm:$0xf]
    %v629 = vld [vmem:[#allocation7 + $0x48c] sm:$0xf]
    %v630 = vld [vmem:[#allocation7 + $0x490] sm:$0xf]
    %v631 = vld [vmem:[#allocation7 + $0x494] sm:$0xf]
    %v632 = vld [vmem:[#allocation7 + $0x498] sm:$0xf]
    %v633 = vld [vmem:[#allocation7 + $0x49c] sm:$0xf]
    %v634 = vld [vmem:[#allocation7 + $0x4a0] sm:$0xf]
    %v635 = vld [vmem:[#allocation7 + $0x4a4] sm:$0xf]
    %v636 = vld [vmem:[#allocation7 + $0x4a8] sm:$0xf]
    %v637 = vld [vmem:[#allocation7 + $0x4ac] sm:$0xf]
    %v638 = vld [vmem:[#allocation7 + $0x4b0] sm:$0xf]
    %v639 = vld [vmem:[#allocation7 + $0x4b4] sm:$0xf]
    %v640 = vld [vmem:[#allocation7 + $0x4b8] sm:$0xf]
    %v641 = vld [vmem:[#allocation7 + $0x4bc] sm:$0xf]
    %v642 = vld [vmem:[#allocation7 + $0x4c0] sm:$0xf]
    %v643 = vld [vmem:[#allocation7 + $0x4c4] sm:$0xf]
    %v644 = vld [vmem:[#allocation7 + $0x4c8] sm:$0xf]
    %v645 = vld [vmem:[#allocation7 + $0x4cc] sm:$0xf]
    %v646 = vld [vmem:[#allocation7 + $0x4d0] sm:$0xf]
    %v647 = vld [vmem:[#allocation7 + $0x4d4] sm:$0xf]
    %v648 = vld [vmem:[#allocation7 + $0x4d8] sm:$0xf]
    %v649 = vld [vmem:[#allocation7 + $0x4dc] sm:$0xf]
    %v650 = vld [vmem:[#allocation7 + $0x4e0] sm:$0xf]
    %v651 = vld [vmem:[#allocation7 + $0x4e4] sm:$0xf]
    %v652 = vld [vmem:[#allocation7 + $0x4e8] sm:$0xf]
    %v653 = vld [vmem:[#allocation7 + $0x4ec] sm:$0xf]
    %v654 = vld [vmem:[#allocation7 + $0x4f0] sm:$0xf]
    %v655 = vld [vmem:[#allocation7 + $0x4f4] sm:$0xf]
    %v656 = vld [vmem:[#allocation7 + $0x4f8] sm:$0xf]
    %v657 = vld [vmem:[#allocation7 + $0x4fc] sm:$0xf]
    %v658 = vld [vmem:[#allocation7 + $0x500] sm:$0xf]
    %v659 = vld [vmem:[#allocation7 + $0x504] sm:$0xf]
    %v660 = vld [vmem:[#allocation7 + $0x508] sm:$0xf]
    %v661 = vld [vmem:[#allocation7 + $0x50c] sm:$0xf]
    %v662 = vld [vmem:[#allocation7 + $0x510] sm:$0xf]
    %v663 = vld [vmem:[#allocation7 + $0x514] sm:$0xf]
    %v664 = vld [vmem:[#allocation7 + $0x518] sm:$0xf]
    %v665 = vld [vmem:[#allocation7 + $0x51c] sm:$0xf]
    %v666 = vld [vmem:[#allocation7 + $0x520] sm:$0xf]
    %v667 = vld [vmem:[#allocation7 + $0x524] sm:$0xf]
    %v668 = vld [vmem:[#allocation7 + $0x528] sm:$0xf]
    %v669 = vld [vmem:[#allocation7 + $0x52c] sm:$0xf]
    %v670 = vld [vmem:[#allocation7 + $0x530] sm:$0xf]
    %v671 = vld [vmem:[#allocation7 + $0x534] sm:$0xf]
    %v672 = vld [vmem:[#allocation7 + $0x538] sm:$0xf]
    %v673 = vld [vmem:[#allocation7 + $0x53c] sm:$0xf]
    %v674 = vld [vmem:[#allocation7 + $0x540] sm:$0xf]
    %v675 = vld [vmem:[#allocation7 + $0x544] sm:$0xf]
    %v676 = vld [vmem:[#allocation7 + $0x548] sm:$0xf]
    %v677 = vld [vmem:[#allocation7 + $0x54c] sm:$0xf]
    %v678 = vld [vmem:[#allocation7 + $0x550] sm:$0xf]
    %v679 = vld [vmem:[#allocation7 + $0x554] sm:$0xf]
    %v680 = vld [vmem:[#allocation7 + $0x558] sm:$0xf]
    %v681 = vld [vmem:[#allocation7 + $0x55c] sm:$0xf]
    %v682 = vld [vmem:[#allocation7 + $0x560] sm:$0xf]
    %v683 = vld [vmem:[#allocation7 + $0x564] sm:$0xf]
    %v684 = vld [vmem:[#allocation7 + $0x568] sm:$0xf]
    %v685 = vld [vmem:[#allocation7 + $0x56c] sm:$0xf]
    %v686 = vld [vmem:[#allocation7 + $0x570] sm:$0xf]
    %v687 = vld [vmem:[#allocation7 + $0x574] sm:$0xf]
    %v688 = vld [vmem:[#allocation7 + $0x578] sm:$0xf]
    %v689 = vld [vmem:[#allocation7 + $0x57c] sm:$0xf]
    %v690 = vld [vmem:[#allocation7 + $0x580] sm:$0xf]
    %v691 = vld [vmem:[#allocation7 + $0x584] sm:$0xf]
    %v692 = vld [vmem:[#allocation7 + $0x588] sm:$0xf]
    %v693 = vld [vmem:[#allocation7 + $0x58c] sm:$0xf]
    %v694 = vld [vmem:[#allocation7 + $0x590] sm:$0xf]
    %v695 = vld [vmem:[#allocation7 + $0x594] sm:$0xf]
    %v696 = vld [vmem:[#allocation7 + $0x598] sm:$0xf]
    %v697 = vld [vmem:[#allocation7 + $0x59c] sm:$0xf]
    %v698 = vld [vmem:[#allocation7 + $0x5a0] sm:$0xf]
    %v699 = vld [vmem:[#allocation7 + $0x5a4] sm:$0xf]
    %v700 = vld [vmem:[#allocation7 + $0x5a8] sm:$0xf]
    %v701 = vld [vmem:[#allocation7 + $0x5ac] sm:$0xf]
    %v702 = vld [vmem:[#allocation7 + $0x5b0] sm:$0xf]
    %v703 = vld [vmem:[#allocation7 + $0x5b4] sm:$0xf]
    %v704 = vld [vmem:[#allocation7 + $0x5b8] sm:$0xf]
    %v705 = vld [vmem:[#allocation7 + $0x5bc] sm:$0xf]
    %v706 = vld [vmem:[#allocation7 + $0x5c0] sm:$0xf]
    %v707 = vld [vmem:[#allocation7 + $0x5c4] sm:$0xf]
    %v708 = vld [vmem:[#allocation7 + $0x5c8] sm:$0xf]
    %v709 = vld [vmem:[#allocation7 + $0x5cc] sm:$0xf]
    %v710 = vld [vmem:[#allocation7 + $0x5d0] sm:$0xf]
    %v711 = vld [vmem:[#allocation7 + $0x5d4] sm:$0xf]
    %v712 = vld [vmem:[#allocation7 + $0x5d8] sm:$0xf]
    %v713 = vld [vmem:[#allocation7 + $0x5dc] sm:$0xf]
    %v714 = vld [vmem:[#allocation7 + $0x5e0] sm:$0xf]
    %v715 = vld [vmem:[#allocation7 + $0x5e4] sm:$0xf]
    %v716 = vld [vmem:[#allocation7 + $0x5e8] sm:$0xf]
    %v717 = vld [vmem:[#allocation7 + $0x5ec] sm:$0xf]
    %v718 = vld [vmem:[#allocation7 + $0x5f0] sm:$0xf]
    %v719 = vld [vmem:[#allocation7 + $0x5f4] sm:$0xf]
    %v720 = vld [vmem:[#allocation7 + $0x5f8] sm:$0xf]
    %v721 = vld [vmem:[#allocation7 + $0x5fc] sm:$0xf]
    %v722 = vld [vmem:[#allocation7 + $0x600] sm:$0xf]
    %v723 = vld [vmem:[#allocation7 + $0x604] sm:$0xf]
    %v724 = vld [vmem:[#allocation7 + $0x608] sm:$0xf]
    %v725 = vld [vmem:[#allocation7 + $0x60c] sm:$0xf]
    %v726 = vld [vmem:[#allocation7 + $0x610] sm:$0xf]
    %v727 = vld [vmem:[#allocation7 + $0x614] sm:$0xf]
    %v728 = vld [vmem:[#allocation7 + $0x618] sm:$0xf]
    %v729 = vld [vmem:[#allocation7 + $0x61c] sm:$0xf]
    %v730 = vld [vmem:[#allocation7 + $0x620] sm:$0xf]
    %v731 = vld [vmem:[#allocation7 + $0x624] sm:$0xf]
    %v732 = vld [vmem:[#allocation7 + $0x628] sm:$0xf]
    %v733 = vld [vmem:[#allocation7 + $0x62c] sm:$0xf]
    %v734 = vld [vmem:[#allocation7 + $0x630] sm:$0xf]
    %v735 = vld [vmem:[#allocation7 + $0x634] sm:$0xf]
    %v736 = vld [vmem:[#allocation7 + $0x638] sm:$0xf]
    %v737 = vld [vmem:[#allocation7 + $0x63c] sm:$0xf]
    %v738 = vld [vmem:[#allocation7 + $0x640] sm:$0xf]
    %v739 = vld [vmem:[#allocation7 + $0x644] sm:$0xf]
    %v740 = vld [vmem:[#allocation7 + $0x648] sm:$0xf]
    %v741 = vld [vmem:[#allocation7 + $0x64c] sm:$0xf]
    %v742 = vld [vmem:[#allocation7 + $0x650] sm:$0xf]
    %v743 = vld [vmem:[#allocation7 + $0x654] sm:$0xf]
    %v744 = vld [vmem:[#allocation7 + $0x658] sm:$0xf]
    %v745 = vld [vmem:[#allocation7 + $0x65c] sm:$0xf]
    %v746 = vld [vmem:[#allocation7 + $0x660] sm:$0xf]
    %v747 = vld [vmem:[#allocation7 + $0x664] sm:$0xf]
    %v748 = vld [vmem:[#allocation7 + $0x668] sm:$0xf]
    %v749 = vld [vmem:[#allocation7 + $0x66c] sm:$0xf]
    %v750 = vld [vmem:[#allocation7 + $0x670] sm:$0xf]
    %v751 = vld [vmem:[#allocation7 + $0x674] sm:$0xf]
    %v752 = vld [vmem:[#allocation7 + $0x678] sm:$0xf]
    %v753 = vld [vmem:[#allocation7 + $0x67c] sm:$0xf]
    %v754 = vld [vmem:[#allocation7 + $0x680] sm:$0xf]
    %v755 = vld [vmem:[#allocation7 + $0x684] sm:$0xf]
    %v756 = vld [vmem:[#allocation7 + $0x688] sm:$0xf]
    %v757 = vld [vmem:[#allocation7 + $0x68c] sm:$0xf]
    %v758 = vld [vmem:[#allocation7 + $0x690] sm:$0xf]
    %v759 = vld [vmem:[#allocation7 + $0x694] sm:$0xf]
    %v760 = vld [vmem:[#allocation7 + $0x698] sm:$0xf]
    %v761 = vld [vmem:[#allocation7 + $0x69c] sm:$0xf]
    %v762 = vld [vmem:[#allocation7 + $0x6a0] sm:$0xf]
    %v763 = vld [vmem:[#allocation7 + $0x6a4] sm:$0xf]
    %v764 = vld [vmem:[#allocation7 + $0x6a8] sm:$0xf]
    %v765 = vld [vmem:[#allocation7 + $0x6ac] sm:$0xf]
    %v766 = vld [vmem:[#allocation7 + $0x6b0] sm:$0xf]
    %v767 = vld [vmem:[#allocation7 + $0x6b4] sm:$0xf]
    %v768 = vld [vmem:[#allocation7 + $0x6b8] sm:$0xf]
    %v769 = vld [vmem:[#allocation7 + $0x6bc] sm:$0xf]
    %v770 = vld [vmem:[#allocation7 + $0x6c0] sm:$0xf]
    %v771 = vld [vmem:[#allocation7 + $0x6c4] sm:$0xf]
    %v772 = vld [vmem:[#allocation7 + $0x6c8] sm:$0xf]
    %v773 = vld [vmem:[#allocation7 + $0x6cc] sm:$0xf]
    %v774 = vld [vmem:[#allocation7 + $0x6d0] sm:$0xf]
    %v775 = vld [vmem:[#allocation7 + $0x6d4] sm:$0xf]
    %v776 = vld [vmem:[#allocation7 + $0x6d8] sm:$0xf]
    %v777 = vld [vmem:[#allocation7 + $0x6dc] sm:$0xf]
    %v778 = vld [vmem:[#allocation7 + $0x6e0] sm:$0xf]
    %v779 = vld [vmem:[#allocation7 + $0x6e4] sm:$0xf]
    %v780 = vld [vmem:[#allocation7 + $0x6e8] sm:$0xf]
    %v781 = vld [vmem:[#allocation7 + $0x6ec] sm:$0xf]
    %v782 = vld [vmem:[#allocation7 + $0x6f0] sm:$0xf]
    %v783 = vld [vmem:[#allocation7 + $0x6f4] sm:$0xf]
    %v784 = vld [vmem:[#allocation7 + $0x6f8] sm:$0xf]
    %v785 = vld [vmem:[#allocation7 + $0x6fc] sm:$0xf]
    %v786 = vld [vmem:[#allocation7 + $0x700] sm:$0xf]
    %v787 = vld [vmem:[#allocation7 + $0x704] sm:$0xf]
    %v788 = vld [vmem:[#allocation7 + $0x708] sm:$0xf]
    %v789 = vld [vmem:[#allocation7 + $0x70c] sm:$0xf]
    %v790 = vld [vmem:[#allocation7 + $0x710] sm:$0xf]
    %v791 = vld [vmem:[#allocation7 + $0x714] sm:$0xf]
    %v792 = vld [vmem:[#allocation7 + $0x718] sm:$0xf]
    %v793 = vld [vmem:[#allocation7 + $0x71c] sm:$0xf]
    %v794 = vld [vmem:[#allocation7 + $0x720] sm:$0xf]
    %v795 = vld [vmem:[#allocation7 + $0x724] sm:$0xf]
    %v796 = vld [vmem:[#allocation7 + $0x728] sm:$0xf]
    %v797 = vld [vmem:[#allocation7 + $0x72c] sm:$0xf]
    %v798 = vld [vmem:[#allocation7 + $0x730] sm:$0xf]
    %v799 = vld [vmem:[#allocation7 + $0x734] sm:$0xf]
    %v800 = vld [vmem:[#allocation7 + $0x738] sm:$0xf]
    %v801 = vld [vmem:[#allocation7 + $0x73c] sm:$0xf]
    %v802 = vld [vmem:[#allocation7 + $0x740] sm:$0xf]
    %v803 = vld [vmem:[#allocation7 + $0x744] sm:$0xf]
    %v804 = vld [vmem:[#allocation7 + $0x748] sm:$0xf]
    %v805 = vld [vmem:[#allocation7 + $0x74c] sm:$0xf]
    %v806 = vld [vmem:[#allocation7 + $0x750] sm:$0xf]
    %v807 = vld [vmem:[#allocation7 + $0x754] sm:$0xf]
    %v808 = vld [vmem:[#allocation7 + $0x758] sm:$0xf]
    %v809 = vld [vmem:[#allocation7 + $0x75c] sm:$0xf]
    %v810 = vld [vmem:[#allocation7 + $0x760] sm:$0xf]
    %v811 = vld [vmem:[#allocation7 + $0x764] sm:$0xf]
    %v812 = vld [vmem:[#allocation7 + $0x768] sm:$0xf]
    %v813 = vld [vmem:[#allocation7 + $0x76c] sm:$0xf]
    %v814 = vld [vmem:[#allocation7 + $0x770] sm:$0xf]
    %v815 = vld [vmem:[#allocation7 + $0x774] sm:$0xf]
    %v816 = vld [vmem:[#allocation7 + $0x778] sm:$0xf]
    %v817 = vld [vmem:[#allocation7 + $0x77c] sm:$0xf]
    %v818 = vld [vmem:[#allocation7 + $0x780] sm:$0xf]
    %v819 = vld [vmem:[#allocation7 + $0x784] sm:$0xf]
    %v820 = vld [vmem:[#allocation7 + $0x788] sm:$0xf]
    %v821 = vld [vmem:[#allocation7 + $0x78c] sm:$0xf]
    %v822 = vld [vmem:[#allocation7 + $0x790] sm:$0xf]
    %v823 = vld [vmem:[#allocation7 + $0x794] sm:$0xf]
    %v824 = vld [vmem:[#allocation7 + $0x798] sm:$0xf]
    %v825 = vld [vmem:[#allocation7 + $0x79c] sm:$0xf]
    %v826 = vld [vmem:[#allocation7 + $0x7a0] sm:$0xf]
    %v827 = vld [vmem:[#allocation7 + $0x7a4] sm:$0xf]
    %v828 = vld [vmem:[#allocation7 + $0x7a8] sm:$0xf]
    %v829 = vld [vmem:[#allocation7 + $0x7ac] sm:$0xf]
    %v830 = vld [vmem:[#allocation7 + $0x7b0] sm:$0xf]
    %v831 = vld [vmem:[#allocation7 + $0x7b4] sm:$0xf]
    %v832 = vld [vmem:[#allocation7 + $0x7b8] sm:$0xf]
    %v833 = vld [vmem:[#allocation7 + $0x7bc] sm:$0xf]
    %v834 = vld [vmem:[#allocation7 + $0x7c0] sm:$0xf]
    %v835 = vld [vmem:[#allocation7 + $0x7c4] sm:$0xf]
    %v836 = vld [vmem:[#allocation7 + $0x7c8] sm:$0xf]
    %v837 = vld [vmem:[#allocation7 + $0x7cc] sm:$0xf]
    %v838 = vld [vmem:[#allocation7 + $0x7d0] sm:$0xf]
    %v839 = vld [vmem:[#allocation7 + $0x7d4] sm:$0xf]
    %v840 = vld [vmem:[#allocation7 + $0x7d8] sm:$0xf]
    %v841 = vld [vmem:[#allocation7 + $0x7dc] sm:$0xf]
    %v842 = vld [vmem:[#allocation7 + $0x7e0] sm:$0xf]
    %v843 = vld [vmem:[#allocation7 + $0x7e4] sm:$0xf]
    %v844 = vld [vmem:[#allocation7 + $0x7e8] sm:$0xf]
    %v845 = vld [vmem:[#allocation7 + $0x7ec] sm:$0xf]
    %v846 = vld [vmem:[#allocation7 + $0x7f0] sm:$0xf]
    %v847 = vld [vmem:[#allocation7 + $0x7f4] sm:$0xf]
    %v848 = vld [vmem:[#allocation7 + $0x7f8] sm:$0xf]
    %v849 = vld [vmem:[#allocation7 + $0x7fc] sm:$0xf]
    %v850 = vld [vmem:[%s5] sm:$0x1]
    %v852 = vperm.slane %v850, 0
    %v1366 = vunpack.c.l.b16 %v338
    %v1367 = vunpack.c.l.b16 %v339
    %v1368 = vunpack.c.l.b16 %v340
    %v1369 = vunpack.c.l.b16 %v341
    %v1370 = vunpack.c.l.b16 %v342
    %v1371 = vunpack.c.l.b16 %v343
    %v1372 = vunpack.c.l.b16 %v344
    %v1373 = vunpack.c.l.b16 %v345
    %v1374 = vunpack.c.l.b16 %v346
    %v1375 = vunpack.c.l.b16 %v347
    %v1376 = vunpack.c.l.b16 %v348
    %v1377 = vunpack.c.l.b16 %v349
    %v1378 = vunpack.c.l.b16 %v350
    %v1379 = vunpack.c.l.b16 %v351
    %v1380 = vunpack.c.l.b16 %v352
    %v1381 = vunpack.c.l.b16 %v353
    %v1382 = vunpack.c.l.b16 %v354
    %v1383 = vunpack.c.l.b16 %v355
    %v1384 = vunpack.c.l.b16 %v356
    %v1385 = vunpack.c.l.b16 %v357
    %v1386 = vunpack.c.l.b16 %v358
    %v1387 = vunpack.c.l.b16 %v359
    %v1388 = vunpack.c.l.b16 %v360
    %v1389 = vunpack.c.l.b16 %v361
    %v1390 = vunpack.c.l.b16 %v362
    %v1391 = vunpack.c.l.b16 %v363
    %v1392 = vunpack.c.l.b16 %v364
    %v1393 = vunpack.c.l.b16 %v365
    %v1394 = vunpack.c.l.b16 %v366
    %v1395 = vunpack.c.l.b16 %v367
    %v1396 = vunpack.c.l.b16 %v368
    %v1397 = vunpack.c.l.b16 %v369
    %v1398 = vunpack.c.l.b16 %v370
    %v1399 = vunpack.c.l.b16 %v371
    %v1400 = vunpack.c.l.b16 %v372
    %v1401 = vunpack.c.l.b16 %v373
    %v1402 = vunpack.c.l.b16 %v374
    %v1403 = vunpack.c.l.b16 %v375
    %v1404 = vunpack.c.l.b16 %v376
    %v1405 = vunpack.c.l.b16 %v377
    %v1406 = vunpack.c.l.b16 %v378
    %v1407 = vunpack.c.l.b16 %v379
    %v1408 = vunpack.c.l.b16 %v380
    %v1409 = vunpack.c.l.b16 %v381
    %v1410 = vunpack.c.l.b16 %v382
    %v1411 = vunpack.c.l.b16 %v383
    %v1412 = vunpack.c.l.b16 %v384
    %v1413 = vunpack.c.l.b16 %v385
    %v1414 = vunpack.c.l.b16 %v386
    %v1415 = vunpack.c.l.b16 %v387
    %v1416 = vunpack.c.l.b16 %v388
    %v1417 = vunpack.c.l.b16 %v389
    %v1418 = vunpack.c.l.b16 %v390
    %v1419 = vunpack.c.l.b16 %v391
    %v1420 = vunpack.c.l.b16 %v392
    %v1421 = vunpack.c.l.b16 %v393
    %v1422 = vunpack.c.l.b16 %v394
    %v1423 = vunpack.c.l.b16 %v395
    %v1424 = vunpack.c.l.b16 %v396
    %v1425 = vunpack.c.l.b16 %v397
    %v1426 = vunpack.c.l.b16 %v398
    %v1427 = vunpack.c.l.b16 %v399
    %v1428 = vunpack.c.l.b16 %v400
    %v1429 = vunpack.c.l.b16 %v401
    %v1430 = vunpack.c.l.b16 %v402
    %v1431 = vunpack.c.l.b16 %v403
    %v1432 = vunpack.c.l.b16 %v404
    %v1433 = vunpack.c.l.b16 %v405
    %v1434 = vunpack.c.l.b16 %v406
    %v1435 = vunpack.c.l.b16 %v407
    %v1436 = vunpack.c.l.b16 %v408
    %v1437 = vunpack.c.l.b16 %v409
    %v1438 = vunpack.c.l.b16 %v410
    %v1439 = vunpack.c.l.b16 %v411
    %v1440 = vunpack.c.l.b16 %v412
    %v1441 = vunpack.c.l.b16 %v413
    %v1442 = vunpack.c.l.b16 %v414
    %v1443 = vunpack.c.l.b16 %v415
    %v1444 = vunpack.c.l.b16 %v416
    %v1445 = vunpack.c.l.b16 %v417
    %v1446 = vunpack.c.l.b16 %v418
    %v1447 = vunpack.c.l.b16 %v419
    %v1448 = vunpack.c.l.b16 %v420
    %v1449 = vunpack.c.l.b16 %v421
    %v1450 = vunpack.c.l.b16 %v422
    %v1451 = vunpack.c.l.b16 %v423
    %v1452 = vunpack.c.l.b16 %v424
    %v1453 = vunpack.c.l.b16 %v425
    %v1454 = vunpack.c.l.b16 %v426
    %v1455 = vunpack.c.l.b16 %v427
    %v1456 = vunpack.c.l.b16 %v428
    %v1457 = vunpack.c.l.b16 %v429
    %v1458 = vunpack.c.l.b16 %v430
    %v1459 = vunpack.c.l.b16 %v431
    %v1460 = vunpack.c.l.b16 %v432
    %v1461 = vunpack.c.l.b16 %v433
    %v1462 = vunpack.c.l.b16 %v434
    %v1463 = vunpack.c.l.b16 %v435
    %v1464 = vunpack.c.l.b16 %v436
    %v1465 = vunpack.c.l.b16 %v437
    %v1466 = vunpack.c.l.b16 %v438
    %v1467 = vunpack.c.l.b16 %v439
    %v1468 = vunpack.c.l.b16 %v440
    %v1469 = vunpack.c.l.b16 %v441
    %v1470 = vunpack.c.l.b16 %v442
    %v1471 = vunpack.c.l.b16 %v443
    %v1472 = vunpack.c.l.b16 %v444
    %v1473 = vunpack.c.l.b16 %v445
    %v1474 = vunpack.c.l.b16 %v446
    %v1475 = vunpack.c.l.b16 %v447
    %v1476 = vunpack.c.l.b16 %v448
    %v1477 = vunpack.c.l.b16 %v449
    %v1478 = vunpack.c.l.b16 %v450
    %v1479 = vunpack.c.l.b16 %v451
    %v1480 = vunpack.c.l.b16 %v452
    %v1481 = vunpack.c.l.b16 %v453
    %v1482 = vunpack.c.l.b16 %v454
    %v1483 = vunpack.c.l.b16 %v455
    %v1484 = vunpack.c.l.b16 %v456
    %v1485 = vunpack.c.l.b16 %v457
    %v1486 = vunpack.c.l.b16 %v458
    %v1487 = vunpack.c.l.b16 %v459
    %v1488 = vunpack.c.l.b16 %v460
    %v1489 = vunpack.c.l.b16 %v461
    %v1490 = vunpack.c.l.b16 %v462
    %v1491 = vunpack.c.l.b16 %v463
    %v1492 = vunpack.c.l.b16 %v464
    %v1493 = vunpack.c.l.b16 %v465
    %v1494 = vunpack.c.l.b16 %v466
    %v1495 = vunpack.c.l.b16 %v467
    %v1496 = vunpack.c.l.b16 %v468
    %v1497 = vunpack.c.l.b16 %v469
    %v1498 = vunpack.c.l.b16 %v470
    %v1499 = vunpack.c.l.b16 %v471
    %v1500 = vunpack.c.l.b16 %v472
    %v1501 = vunpack.c.l.b16 %v473
    %v1502 = vunpack.c.l.b16 %v474
    %v1503 = vunpack.c.l.b16 %v475
    %v1504 = vunpack.c.l.b16 %v476
    %v1505 = vunpack.c.l.b16 %v477
    %v1506 = vunpack.c.l.b16 %v478
    %v1507 = vunpack.c.l.b16 %v479
    %v1508 = vunpack.c.l.b16 %v480
    %v1509 = vunpack.c.l.b16 %v481
    %v1510 = vunpack.c.l.b16 %v482
    %v1511 = vunpack.c.l.b16 %v483
    %v1512 = vunpack.c.l.b16 %v484
    %v1513 = vunpack.c.l.b16 %v485
    %v1514 = vunpack.c.l.b16 %v486
    %v1515 = vunpack.c.l.b16 %v487
    %v1516 = vunpack.c.l.b16 %v488
    %v1517 = vunpack.c.l.b16 %v489
    %v1518 = vunpack.c.l.b16 %v490
    %v1519 = vunpack.c.l.b16 %v491
    %v1520 = vunpack.c.l.b16 %v492
    %v1521 = vunpack.c.l.b16 %v493
    %v1522 = vunpack.c.l.b16 %v494
    %v1523 = vunpack.c.l.b16 %v495
    %v1524 = vunpack.c.l.b16 %v496
    %v1525 = vunpack.c.l.b16 %v497
    %v1526 = vunpack.c.l.b16 %v498
    %v1527 = vunpack.c.l.b16 %v499
    %v1528 = vunpack.c.l.b16 %v500
    %v1529 = vunpack.c.l.b16 %v501
    %v1530 = vunpack.c.l.b16 %v502
    %v1531 = vunpack.c.l.b16 %v503
    %v1532 = vunpack.c.l.b16 %v504
    %v1533 = vunpack.c.l.b16 %v505
    %v1534 = vunpack.c.l.b16 %v506
    %v1535 = vunpack.c.l.b16 %v507
    %v1536 = vunpack.c.l.b16 %v508
    %v1537 = vunpack.c.l.b16 %v509
    %v1538 = vunpack.c.l.b16 %v510
    %v1539 = vunpack.c.l.b16 %v511
    %v1540 = vunpack.c.l.b16 %v512
    %v1541 = vunpack.c.l.b16 %v513
    %v1542 = vunpack.c.l.b16 %v514
    %v1543 = vunpack.c.l.b16 %v515
    %v1544 = vunpack.c.l.b16 %v516
    %v1545 = vunpack.c.l.b16 %v517
    %v1546 = vunpack.c.l.b16 %v518
    %v1547 = vunpack.c.l.b16 %v519
    %v1548 = vunpack.c.l.b16 %v520
    %v1549 = vunpack.c.l.b16 %v521
    %v1550 = vunpack.c.l.b16 %v522
    %v1551 = vunpack.c.l.b16 %v523
    %v1552 = vunpack.c.l.b16 %v524
    %v1553 = vunpack.c.l.b16 %v525
    %v1554 = vunpack.c.l.b16 %v526
    %v1555 = vunpack.c.l.b16 %v527
    %v1556 = vunpack.c.l.b16 %v528
    %v1557 = vunpack.c.l.b16 %v529
    %v1558 = vunpack.c.l.b16 %v530
    %v1559 = vunpack.c.l.b16 %v531
    %v1560 = vunpack.c.l.b16 %v532
    %v1561 = vunpack.c.l.b16 %v533
    %v1562 = vunpack.c.l.b16 %v534
    %v1563 = vunpack.c.l.b16 %v535
    %v1564 = vunpack.c.l.b16 %v536
    %v1565 = vunpack.c.l.b16 %v537
    %v1566 = vunpack.c.l.b16 %v538
    %v1567 = vunpack.c.l.b16 %v539
    %v1568 = vunpack.c.l.b16 %v540
    %v1569 = vunpack.c.l.b16 %v541
    %v1570 = vunpack.c.l.b16 %v542
    %v1571 = vunpack.c.l.b16 %v543
    %v1572 = vunpack.c.l.b16 %v544
    %v1573 = vunpack.c.l.b16 %v545
    %v1574 = vunpack.c.l.b16 %v546
    %v1575 = vunpack.c.l.b16 %v547
    %v1576 = vunpack.c.l.b16 %v548
    %v1577 = vunpack.c.l.b16 %v549
    %v1578 = vunpack.c.l.b16 %v550
    %v1579 = vunpack.c.l.b16 %v551
    %v1580 = vunpack.c.l.b16 %v552
    %v1581 = vunpack.c.l.b16 %v553
    %v1582 = vunpack.c.l.b16 %v554
    %v1583 = vunpack.c.l.b16 %v555
    %v1584 = vunpack.c.l.b16 %v556
    %v1585 = vunpack.c.l.b16 %v557
    %v1586 = vunpack.c.l.b16 %v558
    %v1587 = vunpack.c.l.b16 %v559
    %v1588 = vunpack.c.l.b16 %v560
    %v1589 = vunpack.c.l.b16 %v561
    %v1590 = vunpack.c.l.b16 %v562
    %v1591 = vunpack.c.l.b16 %v563
    %v1592 = vunpack.c.l.b16 %v564
    %v1593 = vunpack.c.l.b16 %v565
    %v1594 = vunpack.c.l.b16 %v566
    %v1595 = vunpack.c.l.b16 %v567
    %v1596 = vunpack.c.l.b16 %v568
    %v1597 = vunpack.c.l.b16 %v569
    %v1598 = vunpack.c.l.b16 %v570
    %v1599 = vunpack.c.l.b16 %v571
    %v1600 = vunpack.c.l.b16 %v572
    %v1601 = vunpack.c.l.b16 %v573
    %v1602 = vunpack.c.l.b16 %v574
    %v1603 = vunpack.c.l.b16 %v575
    %v1604 = vunpack.c.l.b16 %v576
    %v1605 = vunpack.c.l.b16 %v577
    %v1606 = vunpack.c.l.b16 %v578
    %v1607 = vunpack.c.l.b16 %v579
    %v1608 = vunpack.c.l.b16 %v580
    %v1609 = vunpack.c.l.b16 %v581
    %v1610 = vunpack.c.l.b16 %v582
    %v1611 = vunpack.c.l.b16 %v583
    %v1612 = vunpack.c.l.b16 %v584
    %v1613 = vunpack.c.l.b16 %v585
    %v1614 = vunpack.c.l.b16 %v586
    %v1615 = vunpack.c.l.b16 %v587
    %v1616 = vunpack.c.l.b16 %v588
    %v1617 = vunpack.c.l.b16 %v589
    %v1618 = vunpack.c.l.b16 %v590
    %v1619 = vunpack.c.l.b16 %v591
    %v1620 = vunpack.c.l.b16 %v592
    %v1621 = vunpack.c.l.b16 %v593
    %v1622 = vunpack.c.l.b16 %v594
    %v1623 = vunpack.c.l.b16 %v595
    %v1624 = vunpack.c.l.b16 %v596
    %v1625 = vunpack.c.l.b16 %v597
    %v1626 = vunpack.c.l.b16 %v598
    %v1627 = vunpack.c.l.b16 %v599
    %v1628 = vunpack.c.l.b16 %v600
    %v1629 = vunpack.c.l.b16 %v601
    %v1630 = vunpack.c.l.b16 %v602
    %v1631 = vunpack.c.l.b16 %v603
    %v1632 = vunpack.c.l.b16 %v604
    %v1633 = vunpack.c.l.b16 %v605
    %v1634 = vunpack.c.l.b16 %v606
    %v1635 = vunpack.c.l.b16 %v607
    %v1636 = vunpack.c.l.b16 %v608
    %v1637 = vunpack.c.l.b16 %v609
    %v1638 = vunpack.c.l.b16 %v610
    %v1639 = vunpack.c.l.b16 %v611
    %v1640 = vunpack.c.l.b16 %v612
    %v1641 = vunpack.c.l.b16 %v613
    %v1642 = vunpack.c.l.b16 %v614
    %v1643 = vunpack.c.l.b16 %v615
    %v1644 = vunpack.c.l.b16 %v616
    %v1645 = vunpack.c.l.b16 %v617
    %v1646 = vunpack.c.l.b16 %v618
    %v1647 = vunpack.c.l.b16 %v619
    %v1648 = vunpack.c.l.b16 %v620
    %v1649 = vunpack.c.l.b16 %v621
    %v1650 = vunpack.c.l.b16 %v622
    %v1651 = vunpack.c.l.b16 %v623
    %v1652 = vunpack.c.l.b16 %v624
    %v1653 = vunpack.c.l.b16 %v625
    %v1654 = vunpack.c.l.b16 %v626
    %v1655 = vunpack.c.l.b16 %v627
    %v1656 = vunpack.c.l.b16 %v628
    %v1657 = vunpack.c.l.b16 %v629
    %v1658 = vunpack.c.l.b16 %v630
    %v1659 = vunpack.c.l.b16 %v631
    %v1660 = vunpack.c.l.b16 %v632
    %v1661 = vunpack.c.l.b16 %v633
    %v1662 = vunpack.c.l.b16 %v634
    %v1663 = vunpack.c.l.b16 %v635
    %v1664 = vunpack.c.l.b16 %v636
    %v1665 = vunpack.c.l.b16 %v637
    %v1666 = vunpack.c.l.b16 %v638
    %v1667 = vunpack.c.l.b16 %v639
    %v1668 = vunpack.c.l.b16 %v640
    %v1669 = vunpack.c.l.b16 %v641
    %v1670 = vunpack.c.l.b16 %v642
    %v1671 = vunpack.c.l.b16 %v643
    %v1672 = vunpack.c.l.b16 %v644
    %v1673 = vunpack.c.l.b16 %v645
    %v1674 = vunpack.c.l.b16 %v646
    %v1675 = vunpack.c.l.b16 %v647
    %v1676 = vunpack.c.l.b16 %v648
    %v1677 = vunpack.c.l.b16 %v649
    %v1678 = vunpack.c.l.b16 %v650
    %v1679 = vunpack.c.l.b16 %v651
    %v1680 = vunpack.c.l.b16 %v652
    %v1681 = vunpack.c.l.b16 %v653
    %v1682 = vunpack.c.l.b16 %v654
    %v1683 = vunpack.c.l.b16 %v655
    %v1684 = vunpack.c.l.b16 %v656
    %v1685 = vunpack.c.l.b16 %v657
    %v1686 = vunpack.c.l.b16 %v658
    %v1687 = vunpack.c.l.b16 %v659
    %v1688 = vunpack.c.l.b16 %v660
    %v1689 = vunpack.c.l.b16 %v661
    %v1690 = vunpack.c.l.b16 %v662
    %v1691 = vunpack.c.l.b16 %v663
    %v1692 = vunpack.c.l.b16 %v664
    %v1693 = vunpack.c.l.b16 %v665
    %v1694 = vunpack.c.l.b16 %v666
    %v1695 = vunpack.c.l.b16 %v667
    %v1696 = vunpack.c.l.b16 %v668
    %v1697 = vunpack.c.l.b16 %v669
    %v1698 = vunpack.c.l.b16 %v670
    %v1699 = vunpack.c.l.b16 %v671
    %v1700 = vunpack.c.l.b16 %v672
    %v1701 = vunpack.c.l.b16 %v673
    %v1702 = vunpack.c.l.b16 %v674
    %v1703 = vunpack.c.l.b16 %v675
    %v1704 = vunpack.c.l.b16 %v676
    %v1705 = vunpack.c.l.b16 %v677
    %v1706 = vunpack.c.l.b16 %v678
    %v1707 = vunpack.c.l.b16 %v679
    %v1708 = vunpack.c.l.b16 %v680
    %v1709 = vunpack.c.l.b16 %v681
    %v1710 = vunpack.c.l.b16 %v682
    %v1711 = vunpack.c.l.b16 %v683
    %v1712 = vunpack.c.l.b16 %v684
    %v1713 = vunpack.c.l.b16 %v685
    %v1714 = vunpack.c.l.b16 %v686
    %v1715 = vunpack.c.l.b16 %v687
    %v1716 = vunpack.c.l.b16 %v688
    %v1717 = vunpack.c.l.b16 %v689
    %v1718 = vunpack.c.l.b16 %v690
    %v1719 = vunpack.c.l.b16 %v691
    %v1720 = vunpack.c.l.b16 %v692
    %v1721 = vunpack.c.l.b16 %v693
    %v1722 = vunpack.c.l.b16 %v694
    %v1723 = vunpack.c.l.b16 %v695
    %v1724 = vunpack.c.l.b16 %v696
    %v1725 = vunpack.c.l.b16 %v697
    %v1726 = vunpack.c.l.b16 %v698
    %v1727 = vunpack.c.l.b16 %v699
    %v1728 = vunpack.c.l.b16 %v700
    %v1729 = vunpack.c.l.b16 %v701
    %v1730 = vunpack.c.l.b16 %v702
    %v1731 = vunpack.c.l.b16 %v703
    %v1732 = vunpack.c.l.b16 %v704
    %v1733 = vunpack.c.l.b16 %v705
    %v1734 = vunpack.c.l.b16 %v706
    %v1735 = vunpack.c.l.b16 %v707
    %v1736 = vunpack.c.l.b16 %v708
    %v1737 = vunpack.c.l.b16 %v709
    %v1738 = vunpack.c.l.b16 %v710
    %v1739 = vunpack.c.l.b16 %v711
    %v1740 = vunpack.c.l.b16 %v712
    %v1741 = vunpack.c.l.b16 %v713
    %v1742 = vunpack.c.l.b16 %v714
    %v1743 = vunpack.c.l.b16 %v715
    %v1744 = vunpack.c.l.b16 %v716
    %v1745 = vunpack.c.l.b16 %v717
    %v1746 = vunpack.c.l.b16 %v718
    %v1747 = vunpack.c.l.b16 %v719
    %v1748 = vunpack.c.l.b16 %v720
    %v1749 = vunpack.c.l.b16 %v721
    %v1750 = vunpack.c.l.b16 %v722
    %v1751 = vunpack.c.l.b16 %v723
    %v1752 = vunpack.c.l.b16 %v724
    %v1753 = vunpack.c.l.b16 %v725
    %v1754 = vunpack.c.l.b16 %v726
    %v1755 = vunpack.c.l.b16 %v727
    %v1756 = vunpack.c.l.b16 %v728
    %v1757 = vunpack.c.l.b16 %v729
    %v1758 = vunpack.c.l.b16 %v730
    %v1759 = vunpack.c.l.b16 %v731
    %v1760 = vunpack.c.l.b16 %v732
    %v1761 = vunpack.c.l.b16 %v733
    %v1762 = vunpack.c.l.b16 %v734
    %v1763 = vunpack.c.l.b16 %v735
    %v1764 = vunpack.c.l.b16 %v736
    %v1765 = vunpack.c.l.b16 %v737
    %v1766 = vunpack.c.l.b16 %v738
    %v1767 = vunpack.c.l.b16 %v739
    %v1768 = vunpack.c.l.b16 %v740
    %v1769 = vunpack.c.l.b16 %v741
    %v1770 = vunpack.c.l.b16 %v742
    %v1771 = vunpack.c.l.b16 %v743
    %v1772 = vunpack.c.l.b16 %v744
    %v1773 = vunpack.c.l.b16 %v745
    %v1774 = vunpack.c.l.b16 %v746
    %v1775 = vunpack.c.l.b16 %v747
    %v1776 = vunpack.c.l.b16 %v748
    %v1777 = vunpack.c.l.b16 %v749
    %v1778 = vunpack.c.l.b16 %v750
    %v1779 = vunpack.c.l.b16 %v751
    %v1780 = vunpack.c.l.b16 %v752
    %v1781 = vunpack.c.l.b16 %v753
    %v1782 = vunpack.c.l.b16 %v754
    %v1783 = vunpack.c.l.b16 %v755
    %v1784 = vunpack.c.l.b16 %v756
    %v1785 = vunpack.c.l.b16 %v757
    %v1786 = vunpack.c.l.b16 %v758
    %v1787 = vunpack.c.l.b16 %v759
    %v1788 = vunpack.c.l.b16 %v760
    %v1789 = vunpack.c.l.b16 %v761
    %v1790 = vunpack.c.l.b16 %v762
    %v1791 = vunpack.c.l.b16 %v763
    %v1792 = vunpack.c.l.b16 %v764
    %v1793 = vunpack.c.l.b16 %v765
    %v1794 = vunpack.c.l.b16 %v766
    %v1795 = vunpack.c.l.b16 %v767
    %v1796 = vunpack.c.l.b16 %v768
    %v1797 = vunpack.c.l.b16 %v769
    %v1798 = vunpack.c.l.b16 %v770
    %v1799 = vunpack.c.l.b16 %v771
    %v1800 = vunpack.c.l.b16 %v772
    %v1801 = vunpack.c.l.b16 %v773
    %v1802 = vunpack.c.l.b16 %v774
    %v1803 = vunpack.c.l.b16 %v775
    %v1804 = vunpack.c.l.b16 %v776
    %v1805 = vunpack.c.l.b16 %v777
    %v1806 = vunpack.c.l.b16 %v778
    %v1807 = vunpack.c.l.b16 %v779
    %v1808 = vunpack.c.l.b16 %v780
    %v1809 = vunpack.c.l.b16 %v781
    %v1810 = vunpack.c.l.b16 %v782
    %v1811 = vunpack.c.l.b16 %v783
    %v1812 = vunpack.c.l.b16 %v784
    %v1813 = vunpack.c.l.b16 %v785
    %v1814 = vunpack.c.l.b16 %v786
    %v1815 = vunpack.c.l.b16 %v787
    %v1816 = vunpack.c.l.b16 %v788
    %v1817 = vunpack.c.l.b16 %v789
    %v1818 = vunpack.c.l.b16 %v790
    %v1819 = vunpack.c.l.b16 %v791
    %v1820 = vunpack.c.l.b16 %v792
    %v1821 = vunpack.c.l.b16 %v793
    %v1822 = vunpack.c.l.b16 %v794
    %v1823 = vunpack.c.l.b16 %v795
    %v1824 = vunpack.c.l.b16 %v796
    %v1825 = vunpack.c.l.b16 %v797
    %v1826 = vunpack.c.l.b16 %v798
    %v1827 = vunpack.c.l.b16 %v799
    %v1828 = vunpack.c.l.b16 %v800
    %v1829 = vunpack.c.l.b16 %v801
    %v1830 = vunpack.c.l.b16 %v802
    %v1831 = vunpack.c.l.b16 %v803
    %v1832 = vunpack.c.l.b16 %v804
    %v1833 = vunpack.c.l.b16 %v805
    %v1834 = vunpack.c.l.b16 %v806
    %v1835 = vunpack.c.l.b16 %v807
    %v1836 = vunpack.c.l.b16 %v808
    %v1837 = vunpack.c.l.b16 %v809
    %v1838 = vunpack.c.l.b16 %v810
    %v1839 = vunpack.c.l.b16 %v811
    %v1840 = vunpack.c.l.b16 %v812
    %v1841 = vunpack.c.l.b16 %v813
    %v1842 = vunpack.c.l.b16 %v814
    %v1843 = vunpack.c.l.b16 %v815
    %v1844 = vunpack.c.l.b16 %v816
    %v1845 = vunpack.c.l.b16 %v817
    %v1846 = vunpack.c.l.b16 %v818
    %v1847 = vunpack.c.l.b16 %v819
    %v1848 = vunpack.c.l.b16 %v820
    %v1849 = vunpack.c.l.b16 %v821
    %v1850 = vunpack.c.l.b16 %v822
    %v1851 = vunpack.c.l.b16 %v823
    %v1852 = vunpack.c.l.b16 %v824
    %v1853 = vunpack.c.l.b16 %v825
    %v1854 = vunpack.c.l.b16 %v826
    %v1855 = vunpack.c.l.b16 %v827
    %v1856 = vunpack.c.l.b16 %v828
    %v1857 = vunpack.c.l.b16 %v829
    %v1858 = vunpack.c.l.b16 %v830
    %v1859 = vunpack.c.l.b16 %v831
    %v1860 = vunpack.c.l.b16 %v832
    %v1861 = vunpack.c.l.b16 %v833
    %v1862 = vunpack.c.l.b16 %v834
    %v1863 = vunpack.c.l.b16 %v835
    %v1864 = vunpack.c.l.b16 %v836
    %v1865 = vunpack.c.l.b16 %v837
    %v1866 = vunpack.c.l.b16 %v838
    %v1867 = vunpack.c.l.b16 %v839
    %v1868 = vunpack.c.l.b16 %v840
    %v1869 = vunpack.c.l.b16 %v841
    %v1870 = vunpack.c.l.b16 %v842
    %v1871 = vunpack.c.l.b16 %v843
    %v1872 = vunpack.c.l.b16 %v844
    %v1873 = vunpack.c.l.b16 %v845
    %v1874 = vunpack.c.l.b16 %v846
    %v1875 = vunpack.c.l.b16 %v847
    %v1876 = vunpack.c.l.b16 %v848
    %v1877 = vunpack.c.l.b16 %v849
    %v1878 = vpack.c.b16 %v1367, %v1366
    %v1879 = vpack.c.b16 %v1369, %v1368
    %v1880 = vpack.c.b16 %v1371, %v1370
    %v1881 = vpack.c.b16 %v1373, %v1372
    %v1882 = vpack.c.b16 %v1375, %v1374
    %v1883 = vpack.c.b16 %v1377, %v1376
    %v1884 = vpack.c.b16 %v1379, %v1378
    %v1885 = vpack.c.b16 %v1381, %v1380
    %v1886 = vpack.c.b16 %v1383, %v1382
    %v1887 = vpack.c.b16 %v1385, %v1384
    %v1888 = vpack.c.b16 %v1387, %v1386
    %v1889 = vpack.c.b16 %v1389, %v1388
    %v1890 = vpack.c.b16 %v1391, %v1390
    %v1891 = vpack.c.b16 %v1393, %v1392
    %v1892 = vpack.c.b16 %v1395, %v1394
    %v1893 = vpack.c.b16 %v1397, %v1396
    %v1894 = vpack.c.b16 %v1399, %v1398
    %v1895 = vpack.c.b16 %v1401, %v1400
    %v1896 = vpack.c.b16 %v1403, %v1402
    %v1897 = vpack.c.b16 %v1405, %v1404
    %v1898 = vpack.c.b16 %v1407, %v1406
    %v1899 = vpack.c.b16 %v1409, %v1408
    %v1900 = vpack.c.b16 %v1411, %v1410
    %v1901 = vpack.c.b16 %v1413, %v1412
    %v1902 = vpack.c.b16 %v1415, %v1414
    %v1903 = vpack.c.b16 %v1417, %v1416
    %v1904 = vpack.c.b16 %v1419, %v1418
    %v1905 = vpack.c.b16 %v1421, %v1420
    %v1906 = vpack.c.b16 %v1423, %v1422
    %v1907 = vpack.c.b16 %v1425, %v1424
    %v1908 = vpack.c.b16 %v1427, %v1426
    %v1909 = vpack.c.b16 %v1429, %v1428
    %v1910 = vpack.c.b16 %v1431, %v1430
    %v1911 = vpack.c.b16 %v1433, %v1432
    %v1912 = vpack.c.b16 %v1435, %v1434
    %v1913 = vpack.c.b16 %v1437, %v1436
    %v1914 = vpack.c.b16 %v1439, %v1438
    %v1915 = vpack.c.b16 %v1441, %v1440
    %v1916 = vpack.c.b16 %v1443, %v1442
    %v1917 = vpack.c.b16 %v1445, %v1444
    %v1918 = vpack.c.b16 %v1447, %v1446
    %v1919 = vpack.c.b16 %v1449, %v1448
    %v1920 = vpack.c.b16 %v1451, %v1450
    %v1921 = vpack.c.b16 %v1453, %v1452
    %v1922 = vpack.c.b16 %v1455, %v1454
    %v1923 = vpack.c.b16 %v1457, %v1456
    %v1924 = vpack.c.b16 %v1459, %v1458
    %v1925 = vpack.c.b16 %v1461, %v1460
    %v1926 = vpack.c.b16 %v1463, %v1462
    %v1927 = vpack.c.b16 %v1465, %v1464
    %v1928 = vpack.c.b16 %v1467, %v1466
    %v1929 = vpack.c.b16 %v1469, %v1468
    %v1930 = vpack.c.b16 %v1471, %v1470
    %v1931 = vpack.c.b16 %v1473, %v1472
    %v1932 = vpack.c.b16 %v1475, %v1474
    %v1933 = vpack.c.b16 %v1477, %v1476
    %v1934 = vpack.c.b16 %v1479, %v1478
    %v1935 = vpack.c.b16 %v1481, %v1480
    %v1936 = vpack.c.b16 %v1483, %v1482
    %v1937 = vpack.c.b16 %v1485, %v1484
    %v1938 = vpack.c.b16 %v1487, %v1486
    %v1939 = vpack.c.b16 %v1489, %v1488
    %v1940 = vpack.c.b16 %v1491, %v1490
    %v1941 = vpack.c.b16 %v1493, %v1492
    %v1942 = vpack.c.b16 %v1495, %v1494
    %v1943 = vpack.c.b16 %v1497, %v1496
    %v1944 = vpack.c.b16 %v1499, %v1498
    %v1945 = vpack.c.b16 %v1501, %v1500
    %v1946 = vpack.c.b16 %v1503, %v1502
    %v1947 = vpack.c.b16 %v1505, %v1504
    %v1948 = vpack.c.b16 %v1507, %v1506
    %v1949 = vpack.c.b16 %v1509, %v1508
    %v1950 = vpack.c.b16 %v1511, %v1510
    %v1951 = vpack.c.b16 %v1513, %v1512
    %v1952 = vpack.c.b16 %v1515, %v1514
    %v1953 = vpack.c.b16 %v1517, %v1516
    %v1954 = vpack.c.b16 %v1519, %v1518
    %v1955 = vpack.c.b16 %v1521, %v1520
    %v1956 = vpack.c.b16 %v1523, %v1522
    %v1957 = vpack.c.b16 %v1525, %v1524
    %v1958 = vpack.c.b16 %v1527, %v1526
    %v1959 = vpack.c.b16 %v1529, %v1528
    %v1960 = vpack.c.b16 %v1531, %v1530
    %v1961 = vpack.c.b16 %v1533, %v1532
    %v1962 = vpack.c.b16 %v1535, %v1534
    %v1963 = vpack.c.b16 %v1537, %v1536
    %v1964 = vpack.c.b16 %v1539, %v1538
    %v1965 = vpack.c.b16 %v1541, %v1540
    %v1966 = vpack.c.b16 %v1543, %v1542
    %v1967 = vpack.c.b16 %v1545, %v1544
    %v1968 = vpack.c.b16 %v1547, %v1546
    %v1969 = vpack.c.b16 %v1549, %v1548
    %v1970 = vpack.c.b16 %v1551, %v1550
    %v1971 = vpack.c.b16 %v1553, %v1552
    %v1972 = vpack.c.b16 %v1555, %v1554
    %v1973 = vpack.c.b16 %v1557, %v1556
    %v1974 = vpack.c.b16 %v1559, %v1558
    %v1975 = vpack.c.b16 %v1561, %v1560
    %v1976 = vpack.c.b16 %v1563, %v1562
    %v1977 = vpack.c.b16 %v1565, %v1564
    %v1978 = vpack.c.b16 %v1567, %v1566
    %v1979 = vpack.c.b16 %v1569, %v1568
    %v1980 = vpack.c.b16 %v1571, %v1570
    %v1981 = vpack.c.b16 %v1573, %v1572
    %v1982 = vpack.c.b16 %v1575, %v1574
    %v1983 = vpack.c.b16 %v1577, %v1576
    %v1984 = vpack.c.b16 %v1579, %v1578
    %v1985 = vpack.c.b16 %v1581, %v1580
    %v1986 = vpack.c.b16 %v1583, %v1582
    %v1987 = vpack.c.b16 %v1585, %v1584
    %v1988 = vpack.c.b16 %v1587, %v1586
    %v1989 = vpack.c.b16 %v1589, %v1588
    %v1990 = vpack.c.b16 %v1591, %v1590
    %v1991 = vpack.c.b16 %v1593, %v1592
    %v1992 = vpack.c.b16 %v1595, %v1594
    %v1993 = vpack.c.b16 %v1597, %v1596
    %v1994 = vpack.c.b16 %v1599, %v1598
    %v1995 = vpack.c.b16 %v1601, %v1600
    %v1996 = vpack.c.b16 %v1603, %v1602
    %v1997 = vpack.c.b16 %v1605, %v1604
    %v1998 = vpack.c.b16 %v1607, %v1606
    %v1999 = vpack.c.b16 %v1609, %v1608
    %v2000 = vpack.c.b16 %v1611, %v1610
    %v2001 = vpack.c.b16 %v1613, %v1612
    %v2002 = vpack.c.b16 %v1615, %v1614
    %v2003 = vpack.c.b16 %v1617, %v1616
    %v2004 = vpack.c.b16 %v1619, %v1618
    %v2005 = vpack.c.b16 %v1621, %v1620
    %v2006 = vpack.c.b16 %v1623, %v1622
    %v2007 = vpack.c.b16 %v1625, %v1624
    %v2008 = vpack.c.b16 %v1627, %v1626
    %v2009 = vpack.c.b16 %v1629, %v1628
    %v2010 = vpack.c.b16 %v1631, %v1630
    %v2011 = vpack.c.b16 %v1633, %v1632
    %v2012 = vpack.c.b16 %v1635, %v1634
    %v2013 = vpack.c.b16 %v1637, %v1636
    %v2014 = vpack.c.b16 %v1639, %v1638
    %v2015 = vpack.c.b16 %v1641, %v1640
    %v2016 = vpack.c.b16 %v1643, %v1642
    %v2017 = vpack.c.b16 %v1645, %v1644
    %v2018 = vpack.c.b16 %v1647, %v1646
    %v2019 = vpack.c.b16 %v1649, %v1648
    %v2020 = vpack.c.b16 %v1651, %v1650
    %v2021 = vpack.c.b16 %v1653, %v1652
    %v2022 = vpack.c.b16 %v1655, %v1654
    %v2023 = vpack.c.b16 %v1657, %v1656
    %v2024 = vpack.c.b16 %v1659, %v1658
    %v2025 = vpack.c.b16 %v1661, %v1660
    %v2026 = vpack.c.b16 %v1663, %v1662
    %v2027 = vpack.c.b16 %v1665, %v1664
    %v2028 = vpack.c.b16 %v1667, %v1666
    %v2029 = vpack.c.b16 %v1669, %v1668
    %v2030 = vpack.c.b16 %v1671, %v1670
    %v2031 = vpack.c.b16 %v1673, %v1672
    %v2032 = vpack.c.b16 %v1675, %v1674
    %v2033 = vpack.c.b16 %v1677, %v1676
    %v2034 = vpack.c.b16 %v1679, %v1678
    %v2035 = vpack.c.b16 %v1681, %v1680
    %v2036 = vpack.c.b16 %v1683, %v1682
    %v2037 = vpack.c.b16 %v1685, %v1684
    %v2038 = vpack.c.b16 %v1687, %v1686
    %v2039 = vpack.c.b16 %v1689, %v1688
    %v2040 = vpack.c.b16 %v1691, %v1690
    %v2041 = vpack.c.b16 %v1693, %v1692
    %v2042 = vpack.c.b16 %v1695, %v1694
    %v2043 = vpack.c.b16 %v1697, %v1696
    %v2044 = vpack.c.b16 %v1699, %v1698
    %v2045 = vpack.c.b16 %v1701, %v1700
    %v2046 = vpack.c.b16 %v1703, %v1702
    %v2047 = vpack.c.b16 %v1705, %v1704
    %v2048 = vpack.c.b16 %v1707, %v1706
    %v2049 = vpack.c.b16 %v1709, %v1708
    %v2050 = vpack.c.b16 %v1711, %v1710
    %v2051 = vpack.c.b16 %v1713, %v1712
    %v2052 = vpack.c.b16 %v1715, %v1714
    %v2053 = vpack.c.b16 %v1717, %v1716
    %v2054 = vpack.c.b16 %v1719, %v1718
    %v2055 = vpack.c.b16 %v1721, %v1720
    %v2056 = vpack.c.b16 %v1723, %v1722
    %v2057 = vpack.c.b16 %v1725, %v1724
    %v2058 = vpack.c.b16 %v1727, %v1726
    %v2059 = vpack.c.b16 %v1729, %v1728
    %v2060 = vpack.c.b16 %v1731, %v1730
    %v2061 = vpack.c.b16 %v1733, %v1732
    %v2062 = vpack.c.b16 %v1735, %v1734
    %v2063 = vpack.c.b16 %v1737, %v1736
    %v2064 = vpack.c.b16 %v1739, %v1738
    %v2065 = vpack.c.b16 %v1741, %v1740
    %v2066 = vpack.c.b16 %v1743, %v1742
    %v2067 = vpack.c.b16 %v1745, %v1744
    %v2068 = vpack.c.b16 %v1747, %v1746
    %v2069 = vpack.c.b16 %v1749, %v1748
    %v2070 = vpack.c.b16 %v1751, %v1750
    %v2071 = vpack.c.b16 %v1753, %v1752
    %v2072 = vpack.c.b16 %v1755, %v1754
    %v2073 = vpack.c.b16 %v1757, %v1756
    %v2074 = vpack.c.b16 %v1759, %v1758
    %v2075 = vpack.c.b16 %v1761, %v1760
    %v2076 = vpack.c.b16 %v1763, %v1762
    %v2077 = vpack.c.b16 %v1765, %v1764
    %v2078 = vpack.c.b16 %v1767, %v1766
    %v2079 = vpack.c.b16 %v1769, %v1768
    %v2080 = vpack.c.b16 %v1771, %v1770
    %v2081 = vpack.c.b16 %v1773, %v1772
    %v2082 = vpack.c.b16 %v1775, %v1774
    %v2083 = vpack.c.b16 %v1777, %v1776
    %v2084 = vpack.c.b16 %v1779, %v1778
    %v2085 = vpack.c.b16 %v1781, %v1780
    %v2086 = vpack.c.b16 %v1783, %v1782
    %v2087 = vpack.c.b16 %v1785, %v1784
    %v2088 = vpack.c.b16 %v1787, %v1786
    %v2089 = vpack.c.b16 %v1789, %v1788
    %v2090 = vpack.c.b16 %v1791, %v1790
    %v2091 = vpack.c.b16 %v1793, %v1792
    %v2092 = vpack.c.b16 %v1795, %v1794
    %v2093 = vpack.c.b16 %v1797, %v1796
    %v2094 = vpack.c.b16 %v1799, %v1798
    %v2095 = vpack.c.b16 %v1801, %v1800
    %v2096 = vpack.c.b16 %v1803, %v1802
    %v2097 = vpack.c.b16 %v1805, %v1804
    %v2098 = vpack.c.b16 %v1807, %v1806
    %v2099 = vpack.c.b16 %v1809, %v1808
    %v2100 = vpack.c.b16 %v1811, %v1810
    %v2101 = vpack.c.b16 %v1813, %v1812
    %v2102 = vpack.c.b16 %v1815, %v1814
    %v2103 = vpack.c.b16 %v1817, %v1816
    %v2104 = vpack.c.b16 %v1819, %v1818
    %v2105 = vpack.c.b16 %v1821, %v1820
    %v2106 = vpack.c.b16 %v1823, %v1822
    %v2107 = vpack.c.b16 %v1825, %v1824
    %v2108 = vpack.c.b16 %v1827, %v1826
    %v2109 = vpack.c.b16 %v1829, %v1828
    %v2110 = vpack.c.b16 %v1831, %v1830
    %v2111 = vpack.c.b16 %v1833, %v1832
    %v2112 = vpack.c.b16 %v1835, %v1834
    %v2113 = vpack.c.b16 %v1837, %v1836
    %v2114 = vpack.c.b16 %v1839, %v1838
    %v2115 = vpack.c.b16 %v1841, %v1840
    %v2116 = vpack.c.b16 %v1843, %v1842
    %v2117 = vpack.c.b16 %v1845, %v1844
    %v2118 = vpack.c.b16 %v1847, %v1846
    %v2119 = vpack.c.b16 %v1849, %v1848
    %v2120 = vpack.c.b16 %v1851, %v1850
    %v2121 = vpack.c.b16 %v1853, %v1852
    %v2122 = vpack.c.b16 %v1855, %v1854
    %v2123 = vpack.c.b16 %v1857, %v1856
    %v2124 = vpack.c.b16 %v1859, %v1858
    %v2125 = vpack.c.b16 %v1861, %v1860
    %v2126 = vpack.c.b16 %v1863, %v1862
    %v2127 = vpack.c.b16 %v1865, %v1864
    %v2128 = vpack.c.b16 %v1867, %v1866
    %v2129 = vpack.c.b16 %v1869, %v1868
    %v2130 = vpack.c.b16 %v1871, %v1870
    %v2131 = vpack.c.b16 %v1873, %v1872
    %v2132 = vpack.c.b16 %v1875, %v1874
    %v2133 = vpack.c.b16 %v1877, %v1876
    %2390 = vmatpush.bf16.msra.mxu0 %v1885
    %2391 = vmatpush.bf16.msra.mxu0 %v1884
    %2392 = vmatpush.bf16.msra.mxu0 %v1883
    %2393 = vmatpush.bf16.msra.mxu0 %v1882
    %2394 = vmatpush.bf16.msra.mxu0 %v1881
    %2395 = vmatpush.bf16.msra.mxu0 %v1880
    %2396 = vmatpush.bf16.msra.mxu0 %v1879
    %2397 = vmatpush.bf16.msra.mxu0 %v1878
    %2398 = vmatmul.bf16.gmra.mxu0 %v306
    %v2399 = vpop.f32.mrf.mxu0
    %v2400 = vadd.f32 %v852, %v2399
    %v2401 = vpop.f32.mrf.mxu0
    %2402 = vdwg.mxu0
    %2403 = vmatpush.bf16.msra.mxu0 %v1893
    %2404 = vmatpush.bf16.msra.mxu0 %v1892
    %2405 = vmatpush.bf16.msra.mxu0 %v1891
    %2406 = vmatpush.bf16.msra.mxu0 %v1890
    %2407 = vmatpush.bf16.msra.mxu0 %v1889
    %2408 = vmatpush.bf16.msra.mxu0 %v1888
    %2409 = vmatpush.bf16.msra.mxu0 %v1887
    %2410 = vmatpush.bf16.msra.mxu0 %v1886
    %2411 = vmatmul.bf16.gmra.mxu0 %v307
    %v2412 = vpop.f32.mrf.mxu0
    %v2413 = vadd.f32 %v2400, %v2412
    %v2414 = vpop.f32.mrf.mxu0
    %2415 = vdwg.mxu0
    %2416 = vmatpush.bf16.msra.mxu0 %v1901
    %2417 = vmatpush.bf16.msra.mxu0 %v1900
    %2418 = vmatpush.bf16.msra.mxu0 %v1899
    %2419 = vmatpush.bf16.msra.mxu0 %v1898
    %2420 = vmatpush.bf16.msra.mxu0 %v1897
    %2421 = vmatpush.bf16.msra.mxu0 %v1896
    %2422 = vmatpush.bf16.msra.mxu0 %v1895
    %2423 = vmatpush.bf16.msra.mxu0 %v1894
    %2424 = vmatmul.bf16.gmra.mxu0 %v308
    %v2425 = vpop.f32.mrf.mxu0
    %v2426 = vadd.f32 %v2413, %v2425
    %v2427 = vpop.f32.mrf.mxu0
    %2428 = vdwg.mxu0
    %2429 = vmatpush.bf16.msra.mxu0 %v1909
    %2430 = vmatpush.bf16.msra.mxu0 %v1908
    %2431 = vmatpush.bf16.msra.mxu0 %v1907
    %2432 = vmatpush.bf16.msra.mxu0 %v1906
    %2433 = vmatpush.bf16.msra.mxu0 %v1905
    %2434 = vmatpush.bf16.msra.mxu0 %v1904
    %2435 = vmatpush.bf16.msra.mxu0 %v1903
    %2436 = vmatpush.bf16.msra.mxu0 %v1902
    %2437 = vmatmul.bf16.gmra.mxu0 %v309
    %v2438 = vpop.f32.mrf.mxu0
    %v2439 = vadd.f32 %v2426, %v2438
    %v2440 = vpop.f32.mrf.mxu0
    %2441 = vdwg.mxu0
    %2442 = vmatpush.bf16.msra.mxu0 %v1917
    %2443 = vmatpush.bf16.msra.mxu0 %v1916
    %2444 = vmatpush.bf16.msra.mxu0 %v1915
    %2445 = vmatpush.bf16.msra.mxu0 %v1914
    %2446 = vmatpush.bf16.msra.mxu0 %v1913
    %2447 = vmatpush.bf16.msra.mxu0 %v1912
    %2448 = vmatpush.bf16.msra.mxu0 %v1911
    %2449 = vmatpush.bf16.msra.mxu0 %v1910
    %2450 = vmatmul.bf16.gmra.mxu0 %v310
    %v2451 = vpop.f32.mrf.mxu0
    %v2452 = vadd.f32 %v2439, %v2451
    %v2453 = vpop.f32.mrf.mxu0
    %2454 = vdwg.mxu0
    %2455 = vmatpush.bf16.msra.mxu0 %v1925
    %2456 = vmatpush.bf16.msra.mxu0 %v1924
    %2457 = vmatpush.bf16.msra.mxu0 %v1923
    %2458 = vmatpush.bf16.msra.mxu0 %v1922
    %2459 = vmatpush.bf16.msra.mxu0 %v1921
    %2460 = vmatpush.bf16.msra.mxu0 %v1920
    %2461 = vmatpush.bf16.msra.mxu0 %v1919
    %2462 = vmatpush.bf16.msra.mxu0 %v1918
    %2463 = vmatmul.bf16.gmra.mxu0 %v311
    %v2464 = vpop.f32.mrf.mxu0
    %v2465 = vadd.f32 %v2452, %v2464
    %v2466 = vpop.f32.mrf.mxu0
    %2467 = vdwg.mxu0
    %2468 = vmatpush.bf16.msra.mxu0 %v1933
    %2469 = vmatpush.bf16.msra.mxu0 %v1932
    %2470 = vmatpush.bf16.msra.mxu0 %v1931
    %2471 = vmatpush.bf16.msra.mxu0 %v1930
    %2472 = vmatpush.bf16.msra.mxu0 %v1929
    %2473 = vmatpush.bf16.msra.mxu0 %v1928
    %2474 = vmatpush.bf16.msra.mxu0 %v1927
    %2475 = vmatpush.bf16.msra.mxu0 %v1926
    %2476 = vmatmul.bf16.gmra.mxu0 %v312
    %v2477 = vpop.f32.mrf.mxu0
    %v2478 = vadd.f32 %v2465, %v2477
    %v2479 = vpop.f32.mrf.mxu0
    %2480 = vdwg.mxu0
    %2481 = vmatpush.bf16.msra.mxu0 %v1941
    %2482 = vmatpush.bf16.msra.mxu0 %v1940
    %2483 = vmatpush.bf16.msra.mxu0 %v1939
    %2484 = vmatpush.bf16.msra.mxu0 %v1938
    %2485 = vmatpush.bf16.msra.mxu0 %v1937
    %2486 = vmatpush.bf16.msra.mxu0 %v1936
    %2487 = vmatpush.bf16.msra.mxu0 %v1935
    %2488 = vmatpush.bf16.msra.mxu0 %v1934
    %2489 = vmatmul.bf16.gmra.mxu0 %v313
    %v2490 = vpop.f32.mrf.mxu0
    %v2491 = vadd.f32 %v2478, %v2490
    %v2492 = vpop.f32.mrf.mxu0
    %2493 = vdwg.mxu0
    %2494 = vmatpush.bf16.msra.mxu0 %v1949
    %2495 = vmatpush.bf16.msra.mxu0 %v1948
    %2496 = vmatpush.bf16.msra.mxu0 %v1947
    %2497 = vmatpush.bf16.msra.mxu0 %v1946
    %2498 = vmatpush.bf16.msra.mxu0 %v1945
    %2499 = vmatpush.bf16.msra.mxu0 %v1944
    %2500 = vmatpush.bf16.msra.mxu0 %v1943
    %2501 = vmatpush.bf16.msra.mxu0 %v1942
    %2502 = vmatmul.bf16.gmra.mxu0 %v314
    %v2503 = vpop.f32.mrf.mxu0
    %v2504 = vadd.f32 %v2491, %v2503
    %v2505 = vpop.f32.mrf.mxu0
    %2506 = vdwg.mxu0
    %2507 = vmatpush.bf16.msra.mxu0 %v1957
    %2508 = vmatpush.bf16.msra.mxu0 %v1956
    %2509 = vmatpush.bf16.msra.mxu0 %v1955
    %2510 = vmatpush.bf16.msra.mxu0 %v1954
    %2511 = vmatpush.bf16.msra.mxu0 %v1953
    %2512 = vmatpush.bf16.msra.mxu0 %v1952
    %2513 = vmatpush.bf16.msra.mxu0 %v1951
    %2514 = vmatpush.bf16.msra.mxu0 %v1950
    %2515 = vmatmul.bf16.gmra.mxu0 %v315
    %v2516 = vpop.f32.mrf.mxu0
    %v2517 = vadd.f32 %v2504, %v2516
    %v2518 = vpop.f32.mrf.mxu0
    %2519 = vdwg.mxu0
    %2520 = vmatpush.bf16.msra.mxu0 %v1965
    %2521 = vmatpush.bf16.msra.mxu0 %v1964
    %2522 = vmatpush.bf16.msra.mxu0 %v1963
    %2523 = vmatpush.bf16.msra.mxu0 %v1962
    %2524 = vmatpush.bf16.msra.mxu0 %v1961
    %2525 = vmatpush.bf16.msra.mxu0 %v1960
    %2526 = vmatpush.bf16.msra.mxu0 %v1959
    %2527 = vmatpush.bf16.msra.mxu0 %v1958
    %2528 = vmatmul.bf16.gmra.mxu0 %v316
    %v2529 = vpop.f32.mrf.mxu0
    %v2530 = vadd.f32 %v2517, %v2529
    %v2531 = vpop.f32.mrf.mxu0
    %2532 = vdwg.mxu0
    %2533 = vmatpush.bf16.msra.mxu0 %v1973
    %2534 = vmatpush.bf16.msra.mxu0 %v1972
    %2535 = vmatpush.bf16.msra.mxu0 %v1971
    %2536 = vmatpush.bf16.msra.mxu0 %v1970
    %2537 = vmatpush.bf16.msra.mxu0 %v1969
    %2538 = vmatpush.bf16.msra.mxu0 %v1968
    %2539 = vmatpush.bf16.msra.mxu0 %v1967
    %2540 = vmatpush.bf16.msra.mxu0 %v1966
    %2541 = vmatmul.bf16.gmra.mxu0 %v317
    %v2542 = vpop.f32.mrf.mxu0
    %v2543 = vadd.f32 %v2530, %v2542
    %v2544 = vpop.f32.mrf.mxu0
    %2545 = vdwg.mxu0
    %2546 = vmatpush.bf16.msra.mxu0 %v1981
    %2547 = vmatpush.bf16.msra.mxu0 %v1980
    %2548 = vmatpush.bf16.msra.mxu0 %v1979
    %2549 = vmatpush.bf16.msra.mxu0 %v1978
    %2550 = vmatpush.bf16.msra.mxu0 %v1977
    %2551 = vmatpush.bf16.msra.mxu0 %v1976
    %2552 = vmatpush.bf16.msra.mxu0 %v1975
    %2553 = vmatpush.bf16.msra.mxu0 %v1974
    %2554 = vmatmul.bf16.gmra.mxu0 %v318
    %v2555 = vpop.f32.mrf.mxu0
    %v2556 = vadd.f32 %v2543, %v2555
    %v2557 = vpop.f32.mrf.mxu0
    %2558 = vdwg.mxu0
    %2559 = vmatpush.bf16.msra.mxu0 %v1989
    %2560 = vmatpush.bf16.msra.mxu0 %v1988
    %2561 = vmatpush.bf16.msra.mxu0 %v1987
    %2562 = vmatpush.bf16.msra.mxu0 %v1986
    %2563 = vmatpush.bf16.msra.mxu0 %v1985
    %2564 = vmatpush.bf16.msra.mxu0 %v1984
    %2565 = vmatpush.bf16.msra.mxu0 %v1983
    %2566 = vmatpush.bf16.msra.mxu0 %v1982
    %2567 = vmatmul.bf16.gmra.mxu0 %v319
    %v2568 = vpop.f32.mrf.mxu0
    %v2569 = vadd.f32 %v2556, %v2568
    %v2570 = vpop.f32.mrf.mxu0
    %2571 = vdwg.mxu0
    %2572 = vmatpush.bf16.msra.mxu0 %v1997
    %2573 = vmatpush.bf16.msra.mxu0 %v1996
    %2574 = vmatpush.bf16.msra.mxu0 %v1995
    %2575 = vmatpush.bf16.msra.mxu0 %v1994
    %2576 = vmatpush.bf16.msra.mxu0 %v1993
    %2577 = vmatpush.bf16.msra.mxu0 %v1992
    %2578 = vmatpush.bf16.msra.mxu0 %v1991
    %2579 = vmatpush.bf16.msra.mxu0 %v1990
    %2580 = vmatmul.bf16.gmra.mxu0 %v320
    %v2581 = vpop.f32.mrf.mxu0
    %v2582 = vadd.f32 %v2569, %v2581
    %v2583 = vpop.f32.mrf.mxu0
    %2584 = vdwg.mxu0
    %2585 = vmatpush.bf16.msra.mxu0 %v2005
    %2586 = vmatpush.bf16.msra.mxu0 %v2004
    %2587 = vmatpush.bf16.msra.mxu0 %v2003
    %2588 = vmatpush.bf16.msra.mxu0 %v2002
    %2589 = vmatpush.bf16.msra.mxu0 %v2001
    %2590 = vmatpush.bf16.msra.mxu0 %v2000
    %2591 = vmatpush.bf16.msra.mxu0 %v1999
    %2592 = vmatpush.bf16.msra.mxu0 %v1998
    %2593 = vmatmul.bf16.gmra.mxu0 %v321
    %v2594 = vpop.f32.mrf.mxu0
    %v2595 = vadd.f32 %v2582, %v2594
    %v2596 = vpop.f32.mrf.mxu0
    %2597 = vdwg.mxu0
    %2598 = vmatpush.bf16.msra.mxu0 %v2013
    %2599 = vmatpush.bf16.msra.mxu0 %v2012
    %2600 = vmatpush.bf16.msra.mxu0 %v2011
    %2601 = vmatpush.bf16.msra.mxu0 %v2010
    %2602 = vmatpush.bf16.msra.mxu0 %v2009
    %2603 = vmatpush.bf16.msra.mxu0 %v2008
    %2604 = vmatpush.bf16.msra.mxu0 %v2007
    %2605 = vmatpush.bf16.msra.mxu0 %v2006
    %2606 = vmatmul.bf16.gmra.mxu0 %v322
    %v2607 = vpop.f32.mrf.mxu0
    %v2608 = vadd.f32 %v2595, %v2607
    %v2609 = vpop.f32.mrf.mxu0
    %2610 = vdwg.mxu0
    %2611 = vmatpush.bf16.msra.mxu0 %v2021
    %2612 = vmatpush.bf16.msra.mxu0 %v2020
    %2613 = vmatpush.bf16.msra.mxu0 %v2019
    %2614 = vmatpush.bf16.msra.mxu0 %v2018
    %2615 = vmatpush.bf16.msra.mxu0 %v2017
    %2616 = vmatpush.bf16.msra.mxu0 %v2016
    %2617 = vmatpush.bf16.msra.mxu0 %v2015
    %2618 = vmatpush.bf16.msra.mxu0 %v2014
    %2619 = vmatmul.bf16.gmra.mxu0 %v323
    %v2620 = vpop.f32.mrf.mxu0
    %v2621 = vadd.f32 %v2608, %v2620
    %v2622 = vpop.f32.mrf.mxu0
    %2623 = vdwg.mxu0
    %2624 = vmatpush.bf16.msra.mxu0 %v2029
    %2625 = vmatpush.bf16.msra.mxu0 %v2028
    %2626 = vmatpush.bf16.msra.mxu0 %v2027
    %2627 = vmatpush.bf16.msra.mxu0 %v2026
    %2628 = vmatpush.bf16.msra.mxu0 %v2025
    %2629 = vmatpush.bf16.msra.mxu0 %v2024
    %2630 = vmatpush.bf16.msra.mxu0 %v2023
    %2631 = vmatpush.bf16.msra.mxu0 %v2022
    %2632 = vmatmul.bf16.gmra.mxu0 %v324
    %v2633 = vpop.f32.mrf.mxu0
    %v2634 = vadd.f32 %v2621, %v2633
    %v2635 = vpop.f32.mrf.mxu0
    %2636 = vdwg.mxu0
    %2637 = vmatpush.bf16.msra.mxu0 %v2037
    %2638 = vmatpush.bf16.msra.mxu0 %v2036
    %2639 = vmatpush.bf16.msra.mxu0 %v2035
    %2640 = vmatpush.bf16.msra.mxu0 %v2034
    %2641 = vmatpush.bf16.msra.mxu0 %v2033
    %2642 = vmatpush.bf16.msra.mxu0 %v2032
    %2643 = vmatpush.bf16.msra.mxu0 %v2031
    %2644 = vmatpush.bf16.msra.mxu0 %v2030
    %2645 = vmatmul.bf16.gmra.mxu0 %v325
    %v2646 = vpop.f32.mrf.mxu0
    %v2647 = vadd.f32 %v2634, %v2646
    %v2648 = vpop.f32.mrf.mxu0
    %2649 = vdwg.mxu0
    %2650 = vmatpush.bf16.msra.mxu0 %v2045
    %2651 = vmatpush.bf16.msra.mxu0 %v2044
    %2652 = vmatpush.bf16.msra.mxu0 %v2043
    %2653 = vmatpush.bf16.msra.mxu0 %v2042
    %2654 = vmatpush.bf16.msra.mxu0 %v2041
    %2655 = vmatpush.bf16.msra.mxu0 %v2040
    %2656 = vmatpush.bf16.msra.mxu0 %v2039
    %2657 = vmatpush.bf16.msra.mxu0 %v2038
    %2658 = vmatmul.bf16.gmra.mxu0 %v326
    %v2659 = vpop.f32.mrf.mxu0
    %v2660 = vadd.f32 %v2647, %v2659
    %v2661 = vpop.f32.mrf.mxu0
    %2662 = vdwg.mxu0
    %2663 = vmatpush.bf16.msra.mxu0 %v2053
    %2664 = vmatpush.bf16.msra.mxu0 %v2052
    %2665 = vmatpush.bf16.msra.mxu0 %v2051
    %2666 = vmatpush.bf16.msra.mxu0 %v2050
    %2667 = vmatpush.bf16.msra.mxu0 %v2049
    %2668 = vmatpush.bf16.msra.mxu0 %v2048
    %2669 = vmatpush.bf16.msra.mxu0 %v2047
    %2670 = vmatpush.bf16.msra.mxu0 %v2046
    %2671 = vmatmul.bf16.gmra.mxu0 %v327
    %v2672 = vpop.f32.mrf.mxu0
    %v2673 = vadd.f32 %v2660, %v2672
    %v2674 = vpop.f32.mrf.mxu0
    %2675 = vdwg.mxu0
    %2676 = vmatpush.bf16.msra.mxu0 %v2061
    %2677 = vmatpush.bf16.msra.mxu0 %v2060
    %2678 = vmatpush.bf16.msra.mxu0 %v2059
    %2679 = vmatpush.bf16.msra.mxu0 %v2058
    %2680 = vmatpush.bf16.msra.mxu0 %v2057
    %2681 = vmatpush.bf16.msra.mxu0 %v2056
    %2682 = vmatpush.bf16.msra.mxu0 %v2055
    %2683 = vmatpush.bf16.msra.mxu0 %v2054
    %2684 = vmatmul.bf16.gmra.mxu0 %v328
    %v2685 = vpop.f32.mrf.mxu0
    %v2686 = vadd.f32 %v2673, %v2685
    %v2687 = vpop.f32.mrf.mxu0
    %2688 = vdwg.mxu0
    %2689 = vmatpush.bf16.msra.mxu0 %v2069
    %2690 = vmatpush.bf16.msra.mxu0 %v2068
    %2691 = vmatpush.bf16.msra.mxu0 %v2067
    %2692 = vmatpush.bf16.msra.mxu0 %v2066
    %2693 = vmatpush.bf16.msra.mxu0 %v2065
    %2694 = vmatpush.bf16.msra.mxu0 %v2064
    %2695 = vmatpush.bf16.msra.mxu0 %v2063
    %2696 = vmatpush.bf16.msra.mxu0 %v2062
    %2697 = vmatmul.bf16.gmra.mxu0 %v329
    %v2698 = vpop.f32.mrf.mxu0
    %v2699 = vadd.f32 %v2686, %v2698
    %v2700 = vpop.f32.mrf.mxu0
    %2701 = vdwg.mxu0
    %2702 = vmatpush.bf16.msra.mxu0 %v2077
    %2703 = vmatpush.bf16.msra.mxu0 %v2076
    %2704 = vmatpush.bf16.msra.mxu0 %v2075
    %2705 = vmatpush.bf16.msra.mxu0 %v2074
    %2706 = vmatpush.bf16.msra.mxu0 %v2073
    %2707 = vmatpush.bf16.msra.mxu0 %v2072
    %2708 = vmatpush.bf16.msra.mxu0 %v2071
    %2709 = vmatpush.bf16.msra.mxu0 %v2070
    %2710 = vmatmul.bf16.gmra.mxu0 %v330
    %v2711 = vpop.f32.mrf.mxu0
    %v2712 = vadd.f32 %v2699, %v2711
    %v2713 = vpop.f32.mrf.mxu0
    %2714 = vdwg.mxu0
    %2715 = vmatpush.bf16.msra.mxu0 %v2085
    %2716 = vmatpush.bf16.msra.mxu0 %v2084
    %2717 = vmatpush.bf16.msra.mxu0 %v2083
    %2718 = vmatpush.bf16.msra.mxu0 %v2082
    %2719 = vmatpush.bf16.msra.mxu0 %v2081
    %2720 = vmatpush.bf16.msra.mxu0 %v2080
    %2721 = vmatpush.bf16.msra.mxu0 %v2079
    %2722 = vmatpush.bf16.msra.mxu0 %v2078
    %2723 = vmatmul.bf16.gmra.mxu0 %v331
    %v2724 = vpop.f32.mrf.mxu0
    %v2725 = vadd.f32 %v2712, %v2724
    %v2726 = vpop.f32.mrf.mxu0
    %2727 = vdwg.mxu0
    %2728 = vmatpush.bf16.msra.mxu0 %v2093
    %2729 = vmatpush.bf16.msra.mxu0 %v2092
    %2730 = vmatpush.bf16.msra.mxu0 %v2091
    %2731 = vmatpush.bf16.msra.mxu0 %v2090
    %2732 = vmatpush.bf16.msra.mxu0 %v2089
    %2733 = vmatpush.bf16.msra.mxu0 %v2088
    %2734 = vmatpush.bf16.msra.mxu0 %v2087
    %2735 = vmatpush.bf16.msra.mxu0 %v2086
    %2736 = vmatmul.bf16.gmra.mxu0 %v332
    %v2737 = vpop.f32.mrf.mxu0
    %v2738 = vadd.f32 %v2725, %v2737
    %v2739 = vpop.f32.mrf.mxu0
    %2740 = vdwg.mxu0
    %2741 = vmatpush.bf16.msra.mxu0 %v2101
    %2742 = vmatpush.bf16.msra.mxu0 %v2100
    %2743 = vmatpush.bf16.msra.mxu0 %v2099
    %2744 = vmatpush.bf16.msra.mxu0 %v2098
    %2745 = vmatpush.bf16.msra.mxu0 %v2097
    %2746 = vmatpush.bf16.msra.mxu0 %v2096
    %2747 = vmatpush.bf16.msra.mxu0 %v2095
    %2748 = vmatpush.bf16.msra.mxu0 %v2094
    %2749 = vmatmul.bf16.gmra.mxu0 %v333
    %v2750 = vpop.f32.mrf.mxu0
    %v2751 = vadd.f32 %v2738, %v2750
    %v2752 = vpop.f32.mrf.mxu0
    %2753 = vdwg.mxu0
    %2754 = vmatpush.bf16.msra.mxu0 %v2109
    %2755 = vmatpush.bf16.msra.mxu0 %v2108
    %2756 = vmatpush.bf16.msra.mxu0 %v2107
    %2757 = vmatpush.bf16.msra.mxu0 %v2106
    %2758 = vmatpush.bf16.msra.mxu0 %v2105
    %2759 = vmatpush.bf16.msra.mxu0 %v2104
    %2760 = vmatpush.bf16.msra.mxu0 %v2103
    %2761 = vmatpush.bf16.msra.mxu0 %v2102
    %2762 = vmatmul.bf16.gmra.mxu0 %v334
    %v2763 = vpop.f32.mrf.mxu0
    %v2764 = vadd.f32 %v2751, %v2763
    %v2765 = vpop.f32.mrf.mxu0
    %2766 = vdwg.mxu0
    %2767 = vmatpush.bf16.msra.mxu0 %v2117
    %2768 = vmatpush.bf16.msra.mxu0 %v2116
    %2769 = vmatpush.bf16.msra.mxu0 %v2115
    %2770 = vmatpush.bf16.msra.mxu0 %v2114
    %2771 = vmatpush.bf16.msra.mxu0 %v2113
    %2772 = vmatpush.bf16.msra.mxu0 %v2112
    %2773 = vmatpush.bf16.msra.mxu0 %v2111
    %2774 = vmatpush.bf16.msra.mxu0 %v2110
    %2775 = vmatmul.bf16.gmra.mxu0 %v335
    %v2776 = vpop.f32.mrf.mxu0
    %v2777 = vadd.f32 %v2764, %v2776
    %v2778 = vpop.f32.mrf.mxu0
    %2779 = vdwg.mxu0
    %2780 = vmatpush.bf16.msra.mxu0 %v2125
    %2781 = vmatpush.bf16.msra.mxu0 %v2124
    %2782 = vmatpush.bf16.msra.mxu0 %v2123
    %2783 = vmatpush.bf16.msra.mxu0 %v2122
    %2784 = vmatpush.bf16.msra.mxu0 %v2121
    %2785 = vmatpush.bf16.msra.mxu0 %v2120
    %2786 = vmatpush.bf16.msra.mxu0 %v2119
    %2787 = vmatpush.bf16.msra.mxu0 %v2118
    %2788 = vmatmul.bf16.gmra.mxu0 %v336
    %v2789 = vpop.f32.mrf.mxu0
    %v2790 = vadd.f32 %v2777, %v2789
    %v2791 = vpop.f32.mrf.mxu0
    %2792 = vdwg.mxu0
    %2793 = vmatpush.bf16.msra.mxu0 %v2133
    %2794 = vmatpush.bf16.msra.mxu0 %v2132
    %2795 = vmatpush.bf16.msra.mxu0 %v2131
    %2796 = vmatpush.bf16.msra.mxu0 %v2130
    %2797 = vmatpush.bf16.msra.mxu0 %v2129
    %2798 = vmatpush.bf16.msra.mxu0 %v2128
    %2799 = vmatpush.bf16.msra.mxu0 %v2127
    %2800 = vmatpush.bf16.msra.mxu0 %v2126
    %2801 = vmatmul.bf16.gmra.mxu0 %v337
    %v2802 = vpop.f32.mrf.mxu0
    %v2803 = vadd.f32 %v2790, %v2802
    %v2804 = vpop.f32.mrf.mxu0
    %2805 = vdwg.mxu0
    %v2806 = vmax.f32 %v2803, 0.0
    %v2807 = vld [vmem:[%s6] sm:$0xff]
    %v2808 = vld [vmem:[%s6 + $0x8] sm:$0xff]
    %v2809 = vld [vmem:[%s6 + $0x10] sm:$0xff]
    %v2810 = vld [vmem:[%s6 + $0x18] sm:$0xff]
    %v2811 = vld [vmem:[%s6 + $0x20] sm:$0xff]
    %v2812 = vld [vmem:[%s6 + $0x28] sm:$0xff]
    %v2813 = vld [vmem:[%s6 + $0x30] sm:$0xff]
    %v2814 = vld [vmem:[%s6 + $0x38] sm:$0xff]
    %v2815 = vld [vmem:[%s6 + $0x40] sm:$0xff]
    %v2816 = vld [vmem:[%s6 + $0x48] sm:$0xff]
    %v2817 = vld [vmem:[%s6 + $0x50] sm:$0xff]
    %v2818 = vld [vmem:[%s6 + $0x58] sm:$0xff]
    %v2819 = vld [vmem:[%s6 + $0x60] sm:$0xff]
    %v2820 = vld [vmem:[%s6 + $0x68] sm:$0xff]
    %v2821 = vld [vmem:[%s6 + $0x70] sm:$0xff]
    %v2822 = vld [vmem:[%s6 + $0x78] sm:$0xff]
    %v2823 = vld [vmem:[#allocation8] sm:$0xff]
    %v2824 = vld [vmem:[#allocation8 + $0x8] sm:$0xff]
    %v2825 = vld [vmem:[#allocation8 + $0x10] sm:$0xff]
    %v2826 = vld [vmem:[#allocation8 + $0x18] sm:$0xff]
    %v2827 = vld [vmem:[#allocation8 + $0x20] sm:$0xff]
    %v2828 = vld [vmem:[#allocation8 + $0x28] sm:$0xff]
    %v2829 = vld [vmem:[#allocation8 + $0x30] sm:$0xff]
    %v2830 = vld [vmem:[#allocation8 + $0x38] sm:$0xff]
    %v2831 = vld [vmem:[#allocation8 + $0x40] sm:$0xff]
    %v2832 = vld [vmem:[#allocation8 + $0x48] sm:$0xff]
    %v2833 = vld [vmem:[#allocation8 + $0x50] sm:$0xff]
    %v2834 = vld [vmem:[#allocation8 + $0x58] sm:$0xff]
    %v2835 = vld [vmem:[#allocation8 + $0x60] sm:$0xff]
    %v2836 = vld [vmem:[#allocation8 + $0x68] sm:$0xff]
    %v2837 = vld [vmem:[#allocation8 + $0x70] sm:$0xff]
    %v2838 = vld [vmem:[#allocation8 + $0x78] sm:$0xff]
    %2839 = vmatpush.msra.mxu0 %v2838
    %2840 = vmatpush.msra.mxu0 %v2837
    %2841 = vmatpush.msra.mxu0 %v2836
    %2842 = vmatpush.msra.mxu0 %v2835
    %2843 = vmatpush.msra.mxu0 %v2834
    %2844 = vmatpush.msra.mxu0 %v2833
    %2845 = vmatpush.msra.mxu0 %v2832
    %2846 = vmatpush.msra.mxu0 %v2831
    %2847 = vmatpush.msra.mxu0 %v2830
    %2848 = vmatpush.msra.mxu0 %v2829
    %2849 = vmatpush.msra.mxu0 %v2828
    %2850 = vmatpush.msra.mxu0 %v2827
    %2851 = vmatpush.msra.mxu0 %v2826
    %2852 = vmatpush.msra.mxu0 %v2825
    %2853 = vmatpush.msra.mxu0 %v2824
    %2854 = vmatpush.msra.mxu0 %v2823
    %2855 = vmatmul.f32.gmra.mxu0 %v2806
    %v2856 = vpop.f32.mrf.mxu0
    %v2857 = vadd.f32 0.0, %v2856
    %2858 = vdwg.mxu0
    %2859 = vmatpush.msra.mxu0 %v2822
    %2860 = vmatpush.msra.mxu0 %v2821
    %2861 = vmatpush.msra.mxu0 %v2820
    %2862 = vmatpush.msra.mxu0 %v2819
    %2863 = vmatpush.msra.mxu0 %v2818
    %2864 = vmatpush.msra.mxu0 %v2817
    %2865 = vmatpush.msra.mxu0 %v2816
    %2866 = vmatpush.msra.mxu0 %v2815
    %2867 = vmatpush.msra.mxu0 %v2814
    %2868 = vmatpush.msra.mxu0 %v2813
    %2869 = vmatpush.msra.mxu0 %v2812
    %2870 = vmatpush.msra.mxu0 %v2811
    %2871 = vmatpush.msra.mxu0 %v2810
    %2872 = vmatpush.msra.mxu0 %v2809
    %2873 = vmatpush.msra.mxu0 %v2808
    %2874 = vmatpush.msra.mxu0 %v2807
    %2875 = vmatmul.f32.gmra.mxu0 %v138
    %v2876 = vpop.f32.mrf.mxu0
    %v2877 = vadd.f32 %v2857, %v2876
    %2878 = vdwg.mxu0
    %v2879 = vld [vmem:[%s8] sm:$0x1]
    %v2881 = vperm.slane %v2879, 0
    %v2883 = vadd.f32 %v2877, %v2881
    %v2884 = vmax.f32 %v2883, 0.0
    %v2885 = vld [vmem:[%s9] sm:$0xff]
    %v2886 = vld [vmem:[%s9 + $0x8] sm:$0xff]
    %v2887 = vld [vmem:[%s9 + $0x10] sm:$0xff]
    %v2888 = vld [vmem:[%s9 + $0x18] sm:$0xff]
    %v2889 = vld [vmem:[%s9 + $0x20] sm:$0xff]
    %v2890 = vld [vmem:[%s9 + $0x28] sm:$0xff]
    %v2891 = vld [vmem:[%s9 + $0x30] sm:$0xff]
    %v2892 = vld [vmem:[%s9 + $0x38] sm:$0xff]
    %v2893 = vld [vmem:[%s9 + $0x40] sm:$0xff]
    %v2894 = vld [vmem:[%s9 + $0x48] sm:$0xff]
    %v2895 = vld [vmem:[%s9 + $0x50] sm:$0xff]
    %v2896 = vld [vmem:[%s9 + $0x58] sm:$0xff]
    %v2897 = vld [vmem:[%s9 + $0x60] sm:$0xff]
    %v2898 = vld [vmem:[%s9 + $0x68] sm:$0xff]
    %v2899 = vld [vmem:[%s9 + $0x70] sm:$0xff]
    %v2900 = vld [vmem:[%s9 + $0x78] sm:$0xff]
    %v2901 = vld [vmem:[#allocation2] sm:$0x1]
    %v2903 = vperm.slane %v2901, 0
    %2905 = vmatpush.msra.mxu0 %v2900
    %2906 = vmatpush.msra.mxu0 %v2899
    %2907 = vmatpush.msra.mxu0 %v2898
    %2908 = vmatpush.msra.mxu0 %v2897
    %2909 = vmatpush.msra.mxu0 %v2896
    %2910 = vmatpush.msra.mxu0 %v2895
    %2911 = vmatpush.msra.mxu0 %v2894
    %2912 = vmatpush.msra.mxu0 %v2893
    %2913 = vmatpush.msra.mxu0 %v2892
    %2914 = vmatpush.msra.mxu0 %v2891
    %2915 = vmatpush.msra.mxu0 %v2890
    %2916 = vmatpush.msra.mxu0 %v2889
    %2917 = vmatpush.msra.mxu0 %v2888
    %2918 = vmatpush.msra.mxu0 %v2887
    %2919 = vmatpush.msra.mxu0 %v2886
    %2920 = vmatpush.msra.mxu0 %v2885
    %2921 = vmatmul.f32.gmra.mxu0 %v2884
    %v2922 = vpop.f32.mrf.mxu0
    %v2923 = vadd.f32 %v2903, %v2922
    %2924 = vdwg.mxu0
    %vm2925 = vcmask 7168
    %2926 = vst.msk [vmem:[#allocation10] sm:$0xff] %vm2925, %v2923
    // Predicated region
    $region62: #{tpu_custom_call.1} parent=1 // pred_check
      _
    $region63: #{tpu_custom_call.1} parent=1 // pred_check_branch
      %2928 = sbr.rel (0) target = $region65
    $region64: #{tpu_custom_call.1} parent=1 // pred_region
      // Predicated region
      $region66: #{tpu_custom_call.1} parent=64 // pred_check
        _
      $region67: #{tpu_custom_call.1} parent=64 // pred_check_branch
        %2930 = sbr.rel (0) target = $region69
      $region68: #{tpu_custom_call.1} parent=64 // pred_region
        // Predicated region
        $region70: #{tpu_custom_call.1} parent=68 // pred_check
          _
        $region71: #{tpu_custom_call.1} parent=68 // pred_check_branch
          %2932 = sbr.rel target = $region73
        $region72: #{tpu_custom_call.1} parent=68 // pred_region
          // Predicated region
          $region85: #{tpu_custom_call.1} parent=72 // pred_check
            _
          $region86: #{tpu_custom_call.1} parent=72 // pred_check_branch
            %2948 = sbr.rel (0) target = $region88
          $region87: #{tpu_custom_call.1} parent=72 // pred_region
            %s2950 = ssub.s32 4, 1
            loop: start=0, step=1, limit=1
            $region89: #{tpu_custom_call.1} parent=87 // loop_pre_header
              _
            $region90: #{tpu_custom_call.1} parent=87 // loop_header
              %s2952 = sphi 0, %s2956
              %p2953 = scmp.ge.s32.totalorder %s2952, 1
              %s2957 = sphi [#allocation10], [#allocation10]
              %s2958 = sphi %s11, %s11
            $region91: #{tpu_custom_call.1} parent=87 // loop_header_branch
              %2955 = sbr.rel (%p2953) target = $region95
            $region92: #{tpu_custom_call.1} parent=87 // loop_body
              %v2959 = vld [vmem:[%s2957] sm:%s2950]
              %2960 = vst [vmem:[%s2958] sm:%s2950] %v2959
            $region93: #{tpu_custom_call.1} parent=87 // loop_footer
              %s2956 = sadd.s32 1, %s2952
            $region94: #{tpu_custom_call.1} parent=87 // loop_footer_branch
              %2951 = sbr.rel target = $region90
            $region95: #{tpu_custom_call.1} parent=87 // loop_exit
              _
          $region88: #{tpu_custom_call.1} parent=72 // pred_fallthru
            _
        $region73: #{tpu_custom_call.1} parent=68 // pred_fallthru
          _
        // Predicated region
        $region74: #{tpu_custom_call.1} parent=68 // pred_check
          _
        $region75: #{tpu_custom_call.1} parent=68 // pred_check_branch
          %2934 = sbr.rel (0) target = $region77
        $region76: #{tpu_custom_call.1} parent=68 // pred_region
          %s2936 = ssub.s32 4, 1
          loop: start=0, step=1, limit=1
          $region78: #{tpu_custom_call.1} parent=76 // loop_pre_header
            _
          $region79: #{tpu_custom_call.1} parent=76 // loop_header
            %s2938 = sphi 0, %s2942
            %p2939 = scmp.ge.s32.totalorder %s2938, 1
            %s2943 = sphi [#allocation10], [#allocation10]
            %s2944 = sphi %s11, %s11
          $region80: #{tpu_custom_call.1} parent=76 // loop_header_branch
            %2941 = sbr.rel (%p2939) target = $region84
          $region81: #{tpu_custom_call.1} parent=76 // loop_body
            %v2945 = vld [vmem:[%s2943] sm:%s2936]
            %2946 = vst [vmem:[%s2944] sm:%s2936] %v2945
          $region82: #{tpu_custom_call.1} parent=76 // loop_footer
            %s2942 = sadd.s32 1, %s2938
          $region83: #{tpu_custom_call.1} parent=76 // loop_footer_branch
            %2937 = sbr.rel target = $region79
          $region84: #{tpu_custom_call.1} parent=76 // loop_exit
            _
        $region77: #{tpu_custom_call.1} parent=68 // pred_fallthru
          _
      $region69: #{tpu_custom_call.1} parent=64 // pred_fallthru
        _
      %2961 = vnop
    $region65: #{tpu_custom_call.1} parent=1 // pred_fallthru
      _
    // Predicated region
    $region96: #{tpu_custom_call.1} parent=1 // pred_check
      _
    $region97: #{tpu_custom_call.1} parent=1 // pred_check_branch
      %2963 = sbr.rel (0) target = $region99
    $region98: #{tpu_custom_call.1} parent=1 // pred_region
      _
    $region99: #{tpu_custom_call.1} parent=1 // pred_fallthru
      _
    %2964 = vsyncpa [#allocation4], 1
    %2965 = vsyncpa [#allocation6], 1
    %2966 = vsyncpa [#allocation9], 1

</llo_original>
